<compile_context>
chip_gen: v7x
topology: tpu7x:2x2x1
jax: 0.10.0
libtpu: 0.0.40
codegen_flags: <defaults>
</compile_context>

<pallas_src>
import jax
import jax.numpy as jnp
from jax.experimental import pallas as pl
from jax.experimental.pallas import tpu as pltpu


def _aux_head_kernel(x_ref, w1_ref, b1_ref, w2_ref, b2_ref, wfc_ref, bfc_ref,
                     out_ref, acc_ref):
    """One (batch-tile, K-tile) grid step of the auxiliary head.

    x_ref  : (TN, KT)      flattened activation slab (KT = c_per * 64), native dtype
    w1_ref : (KT, 512)     fused (pool/25 * conv1x1 * BN1-scale) weight, bf16
    b1_ref : (1, 512)      BN1 bias tiled over the 4 pooled positions, f32
    w2_ref : (512, 768)    2x2 conv weight, (kh,kw,cin)-major rows, BN2 scale folded, bf16
    b2_ref : (1, 768)      BN2 bias, f32
    wfc_ref: (768, CPAD)   classifier weight, class dim padded to 128 lanes, bf16
    bfc_ref: (1, CPAD)     classifier bias (padded), f32
    out_ref: (TN, CPAD)    f32 logits (padded)
    acc_ref: (TN, 512)     f32 accumulator for the fused pool+conv1 matmul
    """
    k = pl.program_id(1)

    @pl.when(k == 0)
    def _():
        acc_ref[...] = jnp.zeros_like(acc_ref)

    # ReLU + bf16 cast feed the MXU operand directly (single pass, no extra temp).
    xk = jnp.maximum(x_ref[...], 0.0).astype(jnp.bfloat16)
    acc_ref[...] += jnp.dot(xk, w1_ref[...], preferred_element_type=jnp.float32)

    @pl.when(k == pl.num_programs(1) - 1)
    def _():
        # h1: (TN, 4*128) = the 4 pooled positions, position-major (matches w2 rows).
        h1 = jnp.maximum(acc_ref[...] + b1_ref[...], 0.0).astype(jnp.bfloat16)
        h2 = jnp.dot(h1, w2_ref[...], preferred_element_type=jnp.float32)
        h2 = jnp.maximum(h2 + b2_ref[...], 0.0).astype(jnp.bfloat16)
        out_ref[...] = (jnp.dot(h2, wfc_ref[...],
                                preferred_element_type=jnp.float32)
                        + bfc_ref[...])


def _fold_bn(gamma, beta, mean, var, eps):
    scale = gamma / jnp.sqrt(var + eps)
    bias = beta - mean * scale
    return scale, bias


def _pool_matrix():
    """(64, 4) matrix implementing AvgPool2d(5, stride=3) on an 8x8 grid.

    Row index = h*8 + w (flattened NCHW spatial index); column index
    pos = i*2 + j matches the (kh, kw) flattening used for the 2x2 conv.
    """
    hw = jnp.arange(64)
    hh, ww = hw // 8, hw % 8
    cols = []
    for i in (0, 1):
        for j in (0, 1):
            m = ((hh >= 3 * i) & (hh <= 3 * i + 4) &
                 (ww >= 3 * j) & (ww <= 3 * j + 4))
            cols.append(m.astype(jnp.float32))
    return jnp.stack(cols, axis=1) / 25.0          # includes the 1/25 pool scale


def auxiliary_head_cifar(x_nchw, params, *, eps=1e-5, batch_tile=None):
    """AuxiliaryHeadCIFAR forward.  x_nchw: (N, C, 8, 8) float32 (PyTorch layout).

    params holds PyTorch-layout tensors:
      conv1_w (128, C, 1, 1);  bn1_{gamma,beta,mean,var} (128,)
      conv2_w (768, 128, 2, 2); bn2_{gamma,beta,mean,var} (768,)
      fc_w (num_classes, 768);  fc_b (num_classes,)
    """
    N, C, H, W = x_nchw.shape
    assert (H, W) == (8, 8), "AuxiliaryHeadCIFAR assumes an 8x8 spatial input"

    c1 = params["conv1_w"].shape[0]                 # 128
    c2 = params["conv2_w"].shape[0]                 # 768
    num_classes = params["fc_w"].shape[0]

    # Free layout-preserving reshape (no transpose, no dtype change): the
    # activation is read from HBM exactly once, by the kernel's own DMA.
    x2d = x_nchw.reshape(N, C * 64)

    # ---- fold BN scales and the pool scale into the conv weights ------------
    s1, b1 = _fold_bn(params["bn1_gamma"], params["bn1_beta"],
                      params["bn1_mean"], params["bn1_var"], eps)
    s2, b2 = _fold_bn(params["bn2_gamma"], params["bn2_beta"],
                      params["bn2_mean"], params["bn2_var"], eps)

    # 1x1 conv (O, I, 1, 1) -> (I, O), BN1 scale folded into the columns.
    w1_io = jnp.transpose(params["conv1_w"].reshape(c1, C)) * s1[None, :]
    # Fuse ReLU-pool with the 1x1 conv:
    #   W1f[c*64 + hw, pos*128 + o] = P[hw, pos] * w1_io[c, o]
    w1f = jnp.einsum("hp,co->chpo", _pool_matrix(), w1_io)
    w1f = w1f.reshape(C * 64, 4 * c1).astype(jnp.bfloat16)
    b1t = jnp.tile(b1, 4).reshape(1, 4 * c1).astype(jnp.float32)

    # 2x2 conv (O, I, kh, kw) -> (kh, kw, I, O) -> (4*I, O), BN2 scale folded.
    w2 = jnp.transpose(params["conv2_w"], (2, 3, 1, 0)).reshape(4 * c1, c2)
    w2 = (w2 * s2[None, :]).astype(jnp.bfloat16)
    b2r = b2.reshape(1, c2).astype(jnp.float32)

    # Classifier padded to a lane-dense (multiple-of-128) class dimension.
    cpad = ((num_classes + 127) // 128) * 128
    wfc = jnp.zeros((c2, cpad), jnp.float32).at[:, :num_classes].set(
        jnp.transpose(params["fc_w"])).astype(jnp.bfloat16)
    bfc = jnp.zeros((1, cpad), jnp.float32).at[:, :num_classes].set(
        params["fc_b"].reshape(1, num_classes))

    # ---- K tiling of the fused pool+conv1 contraction (C*64) ----------------
    # Keep each bf16 weight K-slab <= ~8 MiB so the double-buffered kernel fits
    # comfortably inside v7x's 64 MiB VMEM even for large C.
    kslab_budget = 8 * 1024 * 1024
    c_per = C
    if C * 64 * (4 * c1) * 2 > kslab_budget:
        best = None
        for d in range(2, C + 1, 2):                # even => K tile % 128 == 0
            if C % d == 0 and d * 64 * (4 * c1) * 2 <= kslab_budget:
                best = d
        if best is not None:
            c_per = best
        # else: no suitable even divisor of C; fall back to a single K step.
    nk = C // c_per
    ktile = c_per * 64

    # ---- batch tiling --------------------------------------------------------
    # ~8 MiB per x pipeline buffer (double-buffered -> 16 MiB); cap at 256 which
    # already fills the 256-wide MXU M dim (could go to 512 on 128-MiB parts).
    x_itemsize = jnp.dtype(x2d.dtype).itemsize
    if batch_tile is None:
        tn = (8 * 1024 * 1024) // (ktile * x_itemsize)
    else:
        tn = batch_tile
    tn = max(8, min(256, (tn // 8) * 8))
    tn = min(tn, ((N + 7) // 8) * 8)                # never bigger than the batch
    if batch_tile is None and N > 8:
        # v7x has 2 TensorCores: keep >= 2 steps on the "parallel" batch axis.
        tn = min(tn, max(8, ((pl.cdiv(N, 2) + 7) // 8) * 8))
    nb = pl.cdiv(N, tn)

    out_padded = pl.pallas_call(
        _aux_head_kernel,
        out_shape=jax.ShapeDtypeStruct((N, cpad), jnp.float32),
        grid=(nb, nk),
        in_specs=[
            pl.BlockSpec((tn, ktile), lambda i, k: (i, k)),        # activation
            pl.BlockSpec((ktile, 4 * c1), lambda i, k: (k, 0)),    # fused conv1
            pl.BlockSpec((1, 4 * c1), lambda i, k: (0, 0)),        # BN1 bias
            pl.BlockSpec((4 * c1, c2), lambda i, k: (0, 0)),       # conv2
            pl.BlockSpec((1, c2), lambda i, k: (0, 0)),            # BN2 bias
            pl.BlockSpec((c2, cpad), lambda i, k: (0, 0)),         # classifier W
            pl.BlockSpec((1, cpad), lambda i, k: (0, 0)),          # classifier b
        ],
        out_specs=pl.BlockSpec((tn, cpad), lambda i, k: (i, 0)),
        scratch_shapes=[pltpu.VMEM((tn, 4 * c1), jnp.float32)],
        compiler_params=pltpu.CompilerParams(
            dimension_semantics=("parallel", "arbitrary"),
            vmem_limit_bytes=48 * 1024 * 1024,
        ),
    )(x2d, w1f, b1t, w2, b2r, wfc, bfc)

    return out_padded[:, :num_classes]


def reference(x_nchw, p, eps=1e-5):
    """Independent plain-JAX (lax conv) reference, NCHW, f32, eval-mode BN."""
    h = jnp.maximum(x_nchw, 0.0)
    h = jax.lax.reduce_window(h, 0.0, jax.lax.add,
                              (1, 1, 5, 5), (1, 1, 3, 3), "VALID") / 25.0
    h = jax.lax.conv_general_dilated(h, p["conv1_w"], (1, 1), "VALID",
                                     dimension_numbers=("NCHW", "OIHW", "NCHW"))
    s1 = (p["bn1_gamma"] / jnp.sqrt(p["bn1_var"] + eps)).reshape(1, -1, 1, 1)
    h = jnp.maximum((h - p["bn1_mean"].reshape(1, -1, 1, 1)) * s1
                    + p["bn1_beta"].reshape(1, -1, 1, 1), 0.0)
    h = jax.lax.conv_general_dilated(h, p["conv2_w"], (1, 1), "VALID",
                                     dimension_numbers=("NCHW", "OIHW", "NCHW"))
    s2 = (p["bn2_gamma"] / jnp.sqrt(p["bn2_var"] + eps)).reshape(1, -1, 1, 1)
    h = jnp.maximum((h - p["bn2_mean"].reshape(1, -1, 1, 1)) * s2
                    + p["bn2_beta"].reshape(1, -1, 1, 1), 0.0)
    h = h.reshape(h.shape[0], -1)
    return h @ p["fc_w"].T + p["fc_b"]


if __name__ == "__main__":
    N, C, num_classes = 2, 4, 10
    key = jax.random.PRNGKey(0)
    ks = jax.random.split(key, 16)

    x = jax.random.normal(ks[0], (N, C, 8, 8), jnp.float32)

    params = dict(
        conv1_w=jax.random.normal(ks[1], (128, C, 1, 1), jnp.float32) * 0.1,
        bn1_gamma=1.0 + 0.1 * jax.random.normal(ks[2], (128,), jnp.float32),
        bn1_beta=0.1 * jax.random.normal(ks[3], (128,), jnp.float32),
        bn1_mean=0.05 * jax.random.normal(ks[4], (128,), jnp.float32),
        bn1_var=0.5 + jnp.abs(jax.random.normal(ks[5], (128,), jnp.float32)),
        conv2_w=jax.random.normal(ks[6], (768, 128, 2, 2), jnp.float32) * 0.05,
        bn2_gamma=1.0 + 0.1 * jax.random.normal(ks[7], (768,), jnp.float32),
        bn2_beta=0.1 * jax.random.normal(ks[8], (768,), jnp.float32),
        bn2_mean=0.05 * jax.random.normal(ks[9], (768,), jnp.float32),
        bn2_var=0.5 + jnp.abs(jax.random.normal(ks[10], (768,), jnp.float32)),
        fc_w=jax.random.normal(ks[11], (num_classes, 768), jnp.float32) * 0.05,
        fc_b=jax.random.normal(ks[12], (num_classes,), jnp.float32),
    )

    out = jax.block_until_ready(auxiliary_head_cifar(x, params))
    ref = jax.block_until_ready(reference(x, params))

    assert out.shape == (N, num_classes), out.shape
    # Matmuls use bf16 MXU inputs with f32 accumulation (per perf review), so a
    # slightly looser absolute tolerance than a pure-f32 kernel is expected.
    assert jnp.allclose(out, ref, atol=2e-3, rtol=1e-3), (out, ref)
    print("KERNEL_OK")
</pallas_src>

<mosaic_0001>
module attributes {stable_mosaic.version = 11 : i64} {
  func.func @_aux_head_kernel(%arg0: i32, %arg1: i32, %arg2: memref<8x256xf32, #tpu.memory_space<vmem>>, %arg3: memref<256x512xbf16, #tpu.memory_space<vmem>>, %arg4: memref<1x512xf32, #tpu.memory_space<vmem>>, %arg5: memref<512x768xbf16, #tpu.memory_space<vmem>>, %arg6: memref<1x768xf32, #tpu.memory_space<vmem>>, %arg7: memref<768x128xbf16, #tpu.memory_space<vmem>>, %arg8: memref<1x128xf32, #tpu.memory_space<vmem>>, %arg9: memref<8x128xf32, #tpu.memory_space<vmem>>, %arg10: memref<8x512xf32, #tpu.memory_space<vmem>>) attributes {dimension_semantics = [#tpu.dimension_semantics<parallel>, #tpu.dimension_semantics<arbitrary>], iteration_bounds = array<i64: 1, 1>, scalar_prefetch = 0 : i64, scratch_operands = 1 : i64, tpu.core_type = #tpu.core_type<tc>, window_params = [{transform_indices = @transform_0, window_bounds = array<i64: 8, 256>}, {transform_indices = @transform_1, window_bounds = array<i64: 256, 512>}, {pipeline_mode = #tpu.pipeline_mode<synchronous>, transform_indices = @transform_2, window_bounds = array<i64: 1, 512>}, {pipeline_mode = #tpu.pipeline_mode<synchronous>, transform_indices = @transform_3, window_bounds = array<i64: 512, 768>}, {pipeline_mode = #tpu.pipeline_mode<synchronous>, transform_indices = @transform_4, window_bounds = array<i64: 1, 768>}, {pipeline_mode = #tpu.pipeline_mode<synchronous>, transform_indices = @transform_5, window_bounds = array<i64: 768, 128>}, {pipeline_mode = #tpu.pipeline_mode<synchronous>, transform_indices = @transform_6, window_bounds = array<i64: 1, 128>}, {transform_indices = @transform_7, window_bounds = array<i64: 8, 128>}]} {
    %c0_i32 = arith.constant 0 : i32
    %0 = arith.cmpi eq, %arg1, %c0_i32 : i32
    %1 = arith.extui %0 : i1 to i32
    %c0_i32_0 = arith.constant 0 : i32
    %2 = arith.cmpi ne, %1, %c0_i32_0 : i32
    scf.if %2 {
      %cst_11 = arith.constant 0.000000e+00 : f32
      %15 = vector.broadcast %cst_11 : f32 to vector<8x512xf32>
      %c0_12 = arith.constant 0 : index
      %c0_13 = arith.constant 0 : index
      %16 = vector.load %arg10[%c0_12, %c0_13] : memref<8x512xf32, #tpu.memory_space<vmem>>, vector<8x512xf32>
      tpu.vector_store %arg10[%c0_12, %c0_13], %15 {strides = array<i32>} : memref<8x512xf32, #tpu.memory_space<vmem>>, vector<8x512xf32>,
    } else {
    }
    %c0 = arith.constant 0 : index
    %c0_1 = arith.constant 0 : index
    %3 = vector.load %arg2[%c0, %c0_1] : memref<8x256xf32, #tpu.memory_space<vmem>>, vector<8x256xf32>
    %cst = arith.constant 0.000000e+00 : f32
    %4 = vector.broadcast %cst : f32 to vector<8x256xf32>
    %5 = arith.maximumf %3, %4 : vector<8x256xf32>
    %6 = arith.truncf %5 : vector<8x256xf32> to vector<8x256xbf16>
    %c0_2 = arith.constant 0 : index
    %c0_3 = arith.constant 0 : index
    %7 = vector.load %arg10[%c0_2, %c0_3] : memref<8x512xf32, #tpu.memory_space<vmem>>, vector<8x512xf32>
    %c0_4 = arith.constant 0 : index
    %c0_5 = arith.constant 0 : index
    %8 = vector.load %arg3[%c0_4, %c0_5] : memref<256x512xbf16, #tpu.memory_space<vmem>>, vector<256x512xbf16>
    %cst_6 = arith.constant dense<0.000000e+00> : vector<8x512xf32>
    %9 = tpu.matmul %6, %8, %cst_6 {dimension_numbers = #tpu.dot_dimension_numbers<[1], [0], [0], [1], [0, 0, 1, 1], [], []>} : vector<8x256xbf16>, vector<256x512xbf16>, vector<8x512xf32> -> vector<8x512xf32>
    %10 = arith.addf %7, %9 : vector<8x512xf32>
    %c0_7 = arith.constant 0 : index
    %c0_8 = arith.constant 0 : index
    %11 = vector.load %arg10[%c0_7, %c0_8] : memref<8x512xf32, #tpu.memory_space<vmem>>, vector<8x512xf32>
    tpu.vector_store %arg10[%c0_7, %c0_8], %10 {strides = array<i32>} : memref<8x512xf32, #tpu.memory_space<vmem>>, vector<8x512xf32>,
    %c0_i32_9 = arith.constant 0 : i32
    %12 = arith.cmpi eq, %arg1, %c0_i32_9 : i32
    %13 = arith.extui %12 : i1 to i32
    %c0_i32_10 = arith.constant 0 : i32
    %14 = arith.cmpi ne, %13, %c0_i32_10 : i32
    scf.if %14 {
      %c0_11 = arith.constant 0 : index
      %c0_12 = arith.constant 0 : index
      %15 = vector.load %arg10[%c0_11, %c0_12] : memref<8x512xf32, #tpu.memory_space<vmem>>, vector<8x512xf32>
      %c0_13 = arith.constant 0 : index
      %c0_14 = arith.constant 0 : index
      %16 = vector.load %arg4[%c0_13, %c0_14] : memref<1x512xf32, #tpu.memory_space<vmem>>, vector<1x512xf32>
      %17 = vector.broadcast %16 : vector<1x512xf32> to vector<8x512xf32>
      %18 = arith.addf %15, %17 : vector<8x512xf32>
      %cst_15 = arith.constant 0.000000e+00 : f32
      %19 = vector.broadcast %cst_15 : f32 to vector<8x512xf32>
      %20 = arith.maximumf %18, %19 : vector<8x512xf32>
      %21 = arith.truncf %20 : vector<8x512xf32> to vector<8x512xbf16>
      %c0_16 = arith.constant 0 : index
      %c0_17 = arith.constant 0 : index
      %22 = vector.load %arg5[%c0_16, %c0_17] : memref<512x768xbf16, #tpu.memory_space<vmem>>, vector<512x768xbf16>
      %cst_18 = arith.constant dense<0.000000e+00> : vector<8x768xf32>
      %23 = tpu.matmul %21, %22, %cst_18 {dimension_numbers = #tpu.dot_dimension_numbers<[1], [0], [0], [1], [0, 0, 1, 1], [], []>} : vector<8x512xbf16>, vector<512x768xbf16>, vector<8x768xf32> -> vector<8x768xf32>
      %c0_19 = arith.constant 0 : index
      %c0_20 = arith.constant 0 : index
      %24 = vector.load %arg6[%c0_19, %c0_20] : memref<1x768xf32, #tpu.memory_space<vmem>>, vector<1x768xf32>
      %25 = vector.broadcast %24 : vector<1x768xf32> to vector<8x768xf32>
      %26 = arith.addf %23, %25 : vector<8x768xf32>
      %cst_21 = arith.constant 0.000000e+00 : f32
      %27 = vector.broadcast %cst_21 : f32 to vector<8x768xf32>
      %28 = arith.maximumf %26, %27 : vector<8x768xf32>
      %29 = arith.truncf %28 : vector<8x768xf32> to vector<8x768xbf16>
      %c0_22 = arith.constant 0 : index
      %c0_23 = arith.constant 0 : index
      %30 = vector.load %arg7[%c0_22, %c0_23] : memref<768x128xbf16, #tpu.memory_space<vmem>>, vector<768x128xbf16>
      %cst_24 = arith.constant dense<0.000000e+00> : vector<8x128xf32>
      %31 = tpu.matmul %29, %30, %cst_24 {dimension_numbers = #tpu.dot_dimension_numbers<[1], [0], [0], [1], [0, 0, 1, 1], [], []>} : vector<8x768xbf16>, vector<768x128xbf16>, vector<8x128xf32> -> vector<8x128xf32>
      %c0_25 = arith.constant 0 : index
      %c0_26 = arith.constant 0 : index
      %32 = vector.load %arg8[%c0_25, %c0_26] : memref<1x128xf32, #tpu.memory_space<vmem>>, vector<1x128xf32>
      %33 = vector.broadcast %32 : vector<1x128xf32> to vector<8x128xf32>
      %34 = arith.addf %31, %33 : vector<8x128xf32>
      %c0_27 = arith.constant 0 : index
      %c0_28 = arith.constant 0 : index
      %35 = vector.load %arg9[%c0_27, %c0_28] : memref<8x128xf32, #tpu.memory_space<vmem>>, vector<8x128xf32>
      tpu.vector_store %arg9[%c0_27, %c0_28], %34 {strides = array<i32>} : memref<8x128xf32, #tpu.memory_space<vmem>>, vector<8x128xf32>,
    } else {
    }
    return
  }
  func.func @transform_0(%arg0: i32, %arg1: i32) -> (i32, i32) {
    %c0_i32 = arith.constant 0 : i32
    return %arg0, %arg1 : i32, i32
  }
  func.func @transform_1(%arg0: i32, %arg1: i32) -> (i32, i32) {
    %c0_i32 = arith.constant 0 : i32
    %c0_i32_0 = arith.constant 0 : i32
    return %arg1, %c0_i32 : i32, i32
  }
  func.func @transform_2(%arg0: i32, %arg1: i32) -> (i32, i32) {
    %c0_i32 = arith.constant 0 : i32
    %c0_i32_0 = arith.constant 0 : i32
    %c0_i32_1 = arith.constant 0 : i32
    return %c0_i32, %c0_i32_0 : i32, i32
  }
  func.func @transform_3(%arg0: i32, %arg1: i32) -> (i32, i32) {
    %c0_i32 = arith.constant 0 : i32
    %c0_i32_0 = arith.constant 0 : i32
    %c0_i32_1 = arith.constant 0 : i32
    return %c0_i32, %c0_i32_0 : i32, i32
  }
  func.func @transform_4(%arg0: i32, %arg1: i32) -> (i32, i32) {
    %c0_i32 = arith.constant 0 : i32
    %c0_i32_0 = arith.constant 0 : i32
    %c0_i32_1 = arith.constant 0 : i32
    return %c0_i32, %c0_i32_0 : i32, i32
  }
  func.func @transform_5(%arg0: i32, %arg1: i32) -> (i32, i32) {
    %c0_i32 = arith.constant 0 : i32
    %c0_i32_0 = arith.constant 0 : i32
    %c0_i32_1 = arith.constant 0 : i32
    return %c0_i32, %c0_i32_0 : i32, i32
  }
  func.func @transform_6(%arg0: i32, %arg1: i32) -> (i32, i32) {
    %c0_i32 = arith.constant 0 : i32
    %c0_i32_0 = arith.constant 0 : i32
    %c0_i32_1 = arith.constant 0 : i32
    return %c0_i32, %c0_i32_0 : i32, i32
  }
  func.func @transform_7(%arg0: i32, %arg1: i32) -> (i32, i32) {
    %c0_i32 = arith.constant 0 : i32
    %c0_i32_0 = arith.constant 0 : i32
    return %arg0, %c0_i32 : i32, i32
  }
}

</mosaic_0001>

<llo_original>
// kernel: tpu_custom_call.1
$region0: #{tpu_custom_call.1}
  #allocation0 [shape = 'u32[]', space=smem, size = 0x4, offset = 0x4, fixed_abs, tag = 'smem constant byte address 0x4 - core index']
  #allocation1 [shape = 'u32[144,128]{1,0:T(1,128)}', space=vmem, size = 0x12000, scoped, tag = 'internal scratch']
  #allocation2 [shape = 'f32[8,512]{1,0:T(8,128)}', space=vmem, size = 0x4000, scoped, tag = 'scratch operand']
  %s0 = inlined_call_operand.hbm [shape: f32[2,256], index: 0, kind: input, shape index: {}]
  %s1 = inlined_call_operand.hbm [shape: bf16[256,512], index: 1, kind: input, shape index: {}]
  %s2 = inlined_call_operand.vmem [shape: f32[1,512], index: 2, kind: input, shape index: {}]
  %s3 = inlined_call_operand.hbm [shape: bf16[512,768], index: 3, kind: input, shape index: {}]
  %s4 = inlined_call_operand.vmem [shape: f32[1,768], index: 4, kind: input, shape index: {}]
  %s5 = inlined_call_operand.hbm [shape: bf16[768,128], index: 5, kind: input, shape index: {}]
  %s6 = inlined_call_operand.vmem [shape: f32[1,128], index: 6, kind: input, shape index: {}]
  %s7 = inlined_call_operand.hbm [shape: f32[2,128], index: 7, kind: output, shape index: {}]
  %s8 = sld [smem:[#allocation0]]
  $region62: #{tpu_custom_call.1} parent=0
    _
  %s10 = ssub.s32 1, %s8
  %s11 = scalar_select 0, %s10, %s8
  $region1: #{tpu_custom_call.1} parent=0
    #allocation3 [shape = 'u8[8192]{0}', space=vmem, size = 0x2000, scoped, tag = 'input window, operand 0, single buffered']
    #allocation4 [shape = 's32[1]{0}', space=sflag, size = 0x4, scoped, tag = 'scoped memory for tpu_custom_call.1']
    #allocation5 [shape = 's32[1]{0}', space=sflag, size = 0x4, scoped, tag = 'scoped memory for tpu_custom_call.1']
    #allocation6 [shape = 'u8[262144]{0}', space=vmem, size = 0x40000, scoped, tag = 'input window, operand 1, single buffered']
    #allocation7 [shape = 's32[1]{0}', space=sflag, size = 0x4, scoped, tag = 'scoped memory for tpu_custom_call.1']
    #allocation8 [shape = 'u8[786432]{0}', space=vmem, size = 0xc0000, scoped, tag = 'input window, operand 3, single buffered']
    #allocation9 [shape = 'u8[196608]{0}', space=vmem, size = 0x30000, scoped, tag = 'input window, operand 5, single buffered']
    #allocation10 [shape = 's32[1]{0}', space=sflag, size = 0x4, scoped, tag = 'scoped memory for tpu_custom_call.1']
    #allocation11 [shape = 'u8[4096]{0}', space=vmem, size = 0x1000, scoped, tag = 'output window, operand 0, single buffered']
    %12 = vsyncpa [#allocation4], 0
    %13 = vsyncpa [#allocation7], 0
    %14 = vsyncpa [#allocation10], 0
    %15 = vsyncpa [#allocation5], 0
    // Predicated region
    $region2: #{tpu_custom_call.1} parent=1 // pred_check
      _
    $region3: #{tpu_custom_call.1} parent=1 // pred_check_branch
      %17 = sbr.rel (0) target = $region5
    $region4: #{tpu_custom_call.1} parent=1 // pred_region
      %s19 = ssub.s32 256, 64
      %20 = vsyncadd [#allocation4], %s19
      %s21 = sshll.u32 [#allocation3], 4
      %s22 = int_to_ptr.vmem [resolvable:$true] %s21
      %27 = dma.hbm_to_vmem [thread:$0]  %s0, 64, %s22, [#allocation4], 64, 64, 4
    $region5: #{tpu_custom_call.1} parent=1 // pred_fallthru
      _
    // Predicated region
    $region6: #{tpu_custom_call.1} parent=1 // pred_check
      _
    $region7: #{tpu_custom_call.1} parent=1 // pred_check_branch
      %29 = sbr.rel (0) target = $region9
    $region8: #{tpu_custom_call.1} parent=1 // pred_region
      %s31 = ssub.s32 8192, 8192
      %32 = vsyncadd [#allocation7], %s31
      %s33 = sshll.u32 [#allocation6], 4
      %s34 = int_to_ptr.vmem [resolvable:$true] %s33
      %39 = dma.hbm_to_vmem [thread:$0]  %s1, 8192, %s34, [#allocation7], 256, 256, 16
    $region9: #{tpu_custom_call.1} parent=1 // pred_fallthru
      _
    // Predicated region
    $region10: #{tpu_custom_call.1} parent=1 // pred_check
      _
    $region11: #{tpu_custom_call.1} parent=1 // pred_check_branch
      %41 = sbr.rel (0) target = $region13
    $region12: #{tpu_custom_call.1} parent=1 // pred_region
      _
    $region13: #{tpu_custom_call.1} parent=1 // pred_fallthru
      _
    // Predicated region
    $region14: #{tpu_custom_call.1} parent=1 // pred_check
      _
    $region15: #{tpu_custom_call.1} parent=1 // pred_check_branch
      %43 = sbr.rel (0) target = $region17
    $region16: #{tpu_custom_call.1} parent=1 // pred_region
      %s45 = ssub.s32 24576, 24576
      %46 = vsyncadd [#allocation7], %s45
      %s47 = sshll.u32 [#allocation8], 4
      %s48 = int_to_ptr.vmem [resolvable:$true] %s47
      %53 = dma.hbm_to_vmem [thread:$0]  %s3, 24576, %s48, [#allocation7], 384, 384, 24
    $region17: #{tpu_custom_call.1} parent=1 // pred_fallthru
      _
    // Predicated region
    $region18: #{tpu_custom_call.1} parent=1 // pred_check
      _
    $region19: #{tpu_custom_call.1} parent=1 // pred_check_branch
      %55 = sbr.rel (0) target = $region21
    $region20: #{tpu_custom_call.1} parent=1 // pred_region
      _
    $region21: #{tpu_custom_call.1} parent=1 // pred_fallthru
      _
    // Predicated region
    $region22: #{tpu_custom_call.1} parent=1 // pred_check
      _
    $region23: #{tpu_custom_call.1} parent=1 // pred_check_branch
      %57 = sbr.rel (0) target = $region25
    $region24: #{tpu_custom_call.1} parent=1 // pred_region
      %s59 = ssub.s32 6144, 6144
      %60 = vsyncadd [#allocation10], %s59
      %s61 = sshll.u32 [#allocation9], 4
      %s62 = int_to_ptr.vmem [resolvable:$true] %s61
      %67 = dma.hbm_to_vmem [thread:$0]  %s5, 6144, %s62, [#allocation10], 64, 64, 4
    $region25: #{tpu_custom_call.1} parent=1 // pred_fallthru
      _
    // Predicated region
    $region26: #{tpu_custom_call.1} parent=1 // pred_check
      _
    $region27: #{tpu_custom_call.1} parent=1 // pred_check_branch
      %69 = sbr.rel (0) target = $region29
    $region28: #{tpu_custom_call.1} parent=1 // pred_region
      _
    $region29: #{tpu_custom_call.1} parent=1 // pred_fallthru
      _
    // Predicated region
    $region30: #{tpu_custom_call.1} parent=1 // pred_check
      _
    $region31: #{tpu_custom_call.1} parent=1 // pred_check_branch
      %71 = sbr.rel (0) target = $region33
    $region32: #{tpu_custom_call.1} parent=1 // pred_region
      %72 = dma.done [#allocation4], 256
    $region33: #{tpu_custom_call.1} parent=1 // pred_fallthru
      _
    // Predicated region
    $region34: #{tpu_custom_call.1} parent=1 // pred_check
      _
    $region35: #{tpu_custom_call.1} parent=1 // pred_check_branch
      %74 = sbr.rel (0) target = $region37
    $region36: #{tpu_custom_call.1} parent=1 // pred_region
      %75 = dma.done [#allocation7], 8192
    $region37: #{tpu_custom_call.1} parent=1 // pred_fallthru
      _
    // Predicated region
    $region38: #{tpu_custom_call.1} parent=1 // pred_check
      _
    $region39: #{tpu_custom_call.1} parent=1 // pred_check_branch
      %77 = sbr.rel (0) target = $region41
    $region40: #{tpu_custom_call.1} parent=1 // pred_region
      %78 = dma.done [#allocation7], 24576
    $region41: #{tpu_custom_call.1} parent=1 // pred_fallthru
      _
    // Predicated region
    $region42: #{tpu_custom_call.1} parent=1 // pred_check
      _
    $region43: #{tpu_custom_call.1} parent=1 // pred_check_branch
      %80 = sbr.rel (0) target = $region45
    $region44: #{tpu_custom_call.1} parent=1 // pred_region
      %81 = dma.done [#allocation10], 6144
    $region45: #{tpu_custom_call.1} parent=1 // pred_fallthru
      _
    %p83 = scmp.eq.s32.totalorder 0, 0
    // Predicated region
    $region46: #{tpu_custom_call.1} parent=1 // pred_check
      %p84 = pneg %p83
    $region47: #{tpu_custom_call.1} parent=1 // pred_check_branch
      %86 = sbr.rel (%p84) target = $region49
    $region48: #{tpu_custom_call.1} parent=1 // pred_region
      %87 = vst [vmem:[#allocation2] sm:$0xff] 0.0
      %88 = vst [vmem:[#allocation2 + $0x8] sm:$0xff] 0.0
      %89 = vst [vmem:[#allocation2 + $0x10] sm:$0xff] 0.0
      %90 = vst [vmem:[#allocation2 + $0x18] sm:$0xff] 0.0
    $region49: #{tpu_custom_call.1} parent=1 // pred_fallthru
      _
    %v91 = vld [vmem:[#allocation3] sm:$0xf]
    %v92 = vld [vmem:[#allocation3 + $0x4] sm:$0xf]
    %v93 = vld [vmem:[#allocation3 + $0x8] sm:$0xf]
    %v94 = vld [vmem:[#allocation3 + $0xc] sm:$0xf]
    %v95 = vmax.f32 %v91, 0.0
    %v96 = vmax.f32 %v92, 0.0
    %v97 = vmax.f32 %v93, 0.0
    %v98 = vmax.f32 %v94, 0.0
    %v103 = vcombine.low %v95, %v96
    %v104 = vcombine.low %v97, %v98
    %v106 = vunpack.c.l.s4 1983009808
    %v107 = vunpack.c.0.s8 %v106
    %v108 = vlaneseq
    %v109 = vshrl.u32 %v108, 7
    %v110 = vsub.s32 %v107, %v109
    %v111 = vrot.slane %v103, %v110
    %v113 = vunpack.c.l.s4 1983009808
    %v114 = vunpack.c.0.s8 %v113
    %v115 = vlaneseq
    %v116 = vshrl.u32 %v115, 7
    %v117 = vsub.s32 %v114, %v116
    %v118 = vrot.slane %v104, %v117
    %v119 = vcombine.low %v111, %v118
    %v120 = vcombine.high %v111, %v118
    %v123 = vpack.c.bf16 %v119, %v119
    %v124 = vpack.c.bf16 %v120, %v120
    %v125 = vld [vmem:[#allocation2] sm:$0xff]
    %v126 = vld [vmem:[#allocation2 + $0x8] sm:$0xff]
    %v127 = vld [vmem:[#allocation2 + $0x10] sm:$0xff]
    %v128 = vld [vmem:[#allocation2 + $0x18] sm:$0xff]
    %v129 = vld [vmem:[#allocation6] sm:$0xff]
    %v130 = vld [vmem:[#allocation6 + $0x8] sm:$0xff]
    %v131 = vld [vmem:[#allocation6 + $0x10] sm:$0xff]
    %v132 = vld [vmem:[#allocation6 + $0x18] sm:$0xff]
    %v133 = vld [vmem:[#allocation6 + $0x20] sm:$0xff]
    %v134 = vld [vmem:[#allocation6 + $0x28] sm:$0xff]
    %v135 = vld [vmem:[#allocation6 + $0x30] sm:$0xff]
    %v136 = vld [vmem:[#allocation6 + $0x38] sm:$0xff]
    %v137 = vld [vmem:[#allocation6 + $0x40] sm:$0xff]
    %v138 = vld [vmem:[#allocation6 + $0x48] sm:$0xff]
    %v139 = vld [vmem:[#allocation6 + $0x50] sm:$0xff]
    %v140 = vld [vmem:[#allocation6 + $0x58] sm:$0xff]
    %v141 = vld [vmem:[#allocation6 + $0x60] sm:$0xff]
    %v142 = vld [vmem:[#allocation6 + $0x68] sm:$0xff]
    %v143 = vld [vmem:[#allocation6 + $0x70] sm:$0xff]
    %v144 = vld [vmem:[#allocation6 + $0x78] sm:$0xff]
    %v145 = vld [vmem:[#allocation6 + $0x80] sm:$0xff]
    %v146 = vld [vmem:[#allocation6 + $0x88] sm:$0xff]
    %v147 = vld [vmem:[#allocation6 + $0x90] sm:$0xff]
    %v148 = vld [vmem:[#allocation6 + $0x98] sm:$0xff]
    %v149 = vld [vmem:[#allocation6 + $0xa0] sm:$0xff]
    %v150 = vld [vmem:[#allocation6 + $0xa8] sm:$0xff]
    %v151 = vld [vmem:[#allocation6 + $0xb0] sm:$0xff]
    %v152 = vld [vmem:[#allocation6 + $0xb8] sm:$0xff]
    %v153 = vld [vmem:[#allocation6 + $0xc0] sm:$0xff]
    %v154 = vld [vmem:[#allocation6 + $0xc8] sm:$0xff]
    %v155 = vld [vmem:[#allocation6 + $0xd0] sm:$0xff]
    %v156 = vld [vmem:[#allocation6 + $0xd8] sm:$0xff]
    %v157 = vld [vmem:[#allocation6 + $0xe0] sm:$0xff]
    %v158 = vld [vmem:[#allocation6 + $0xe8] sm:$0xff]
    %v159 = vld [vmem:[#allocation6 + $0xf0] sm:$0xff]
    %v160 = vld [vmem:[#allocation6 + $0xf8] sm:$0xff]
    %v161 = vld [vmem:[#allocation6 + $0x100] sm:$0xff]
    %v162 = vld [vmem:[#allocation6 + $0x108] sm:$0xff]
    %v163 = vld [vmem:[#allocation6 + $0x110] sm:$0xff]
    %v164 = vld [vmem:[#allocation6 + $0x118] sm:$0xff]
    %v165 = vld [vmem:[#allocation6 + $0x120] sm:$0xff]
    %v166 = vld [vmem:[#allocation6 + $0x128] sm:$0xff]
    %v167 = vld [vmem:[#allocation6 + $0x130] sm:$0xff]
    %v168 = vld [vmem:[#allocation6 + $0x138] sm:$0xff]
    %v169 = vld [vmem:[#allocation6 + $0x140] sm:$0xff]
    %v170 = vld [vmem:[#allocation6 + $0x148] sm:$0xff]
    %v171 = vld [vmem:[#allocation6 + $0x150] sm:$0xff]
    %v172 = vld [vmem:[#allocation6 + $0x158] sm:$0xff]
    %v173 = vld [vmem:[#allocation6 + $0x160] sm:$0xff]
    %v174 = vld [vmem:[#allocation6 + $0x168] sm:$0xff]
    %v175 = vld [vmem:[#allocation6 + $0x170] sm:$0xff]
    %v176 = vld [vmem:[#allocation6 + $0x178] sm:$0xff]
    %v177 = vld [vmem:[#allocation6 + $0x180] sm:$0xff]
    %v178 = vld [vmem:[#allocation6 + $0x188] sm:$0xff]
    %v179 = vld [vmem:[#allocation6 + $0x190] sm:$0xff]
    %v180 = vld [vmem:[#allocation6 + $0x198] sm:$0xff]
    %v181 = vld [vmem:[#allocation6 + $0x1a0] sm:$0xff]
    %v182 = vld [vmem:[#allocation6 + $0x1a8] sm:$0xff]
    %v183 = vld [vmem:[#allocation6 + $0x1b0] sm:$0xff]
    %v184 = vld [vmem:[#allocation6 + $0x1b8] sm:$0xff]
    %v185 = vld [vmem:[#allocation6 + $0x1c0] sm:$0xff]
    %v186 = vld [vmem:[#allocation6 + $0x1c8] sm:$0xff]
    %v187 = vld [vmem:[#allocation6 + $0x1d0] sm:$0xff]
    %v188 = vld [vmem:[#allocation6 + $0x1d8] sm:$0xff]
    %v189 = vld [vmem:[#allocation6 + $0x1e0] sm:$0xff]
    %v190 = vld [vmem:[#allocation6 + $0x1e8] sm:$0xff]
    %v191 = vld [vmem:[#allocation6 + $0x1f0] sm:$0xff]
    %v192 = vld [vmem:[#allocation6 + $0x1f8] sm:$0xff]
    %v257 = vunpack.c.l.b16 %v129
    %v258 = vunpack.c.h.b16 %v129
    %v259 = vunpack.c.l.b16 %v130
    %v260 = vunpack.c.h.b16 %v130
    %v261 = vunpack.c.l.b16 %v131
    %v262 = vunpack.c.h.b16 %v131
    %v263 = vunpack.c.l.b16 %v132
    %v264 = vunpack.c.h.b16 %v132
    %v265 = vunpack.c.l.b16 %v133
    %v266 = vunpack.c.h.b16 %v133
    %v267 = vunpack.c.l.b16 %v134
    %v268 = vunpack.c.h.b16 %v134
    %v269 = vunpack.c.l.b16 %v135
    %v270 = vunpack.c.h.b16 %v135
    %v271 = vunpack.c.l.b16 %v136
    %v272 = vunpack.c.h.b16 %v136
    %v273 = vunpack.c.l.b16 %v137
    %v274 = vunpack.c.h.b16 %v137
    %v275 = vunpack.c.l.b16 %v138
    %v276 = vunpack.c.h.b16 %v138
    %v277 = vunpack.c.l.b16 %v139
    %v278 = vunpack.c.h.b16 %v139
    %v279 = vunpack.c.l.b16 %v140
    %v280 = vunpack.c.h.b16 %v140
    %v281 = vunpack.c.l.b16 %v141
    %v282 = vunpack.c.h.b16 %v141
    %v283 = vunpack.c.l.b16 %v142
    %v284 = vunpack.c.h.b16 %v142
    %v285 = vunpack.c.l.b16 %v143
    %v286 = vunpack.c.h.b16 %v143
    %v287 = vunpack.c.l.b16 %v144
    %v288 = vunpack.c.h.b16 %v144
    %v289 = vunpack.c.l.b16 %v145
    %v290 = vunpack.c.h.b16 %v145
    %v291 = vunpack.c.l.b16 %v146
    %v292 = vunpack.c.h.b16 %v146
    %v293 = vunpack.c.l.b16 %v147
    %v294 = vunpack.c.h.b16 %v147
    %v295 = vunpack.c.l.b16 %v148
    %v296 = vunpack.c.h.b16 %v148
    %v297 = vunpack.c.l.b16 %v149
    %v298 = vunpack.c.h.b16 %v149
    %v299 = vunpack.c.l.b16 %v150
    %v300 = vunpack.c.h.b16 %v150
    %v301 = vunpack.c.l.b16 %v151
    %v302 = vunpack.c.h.b16 %v151
    %v303 = vunpack.c.l.b16 %v152
    %v304 = vunpack.c.h.b16 %v152
    %v305 = vunpack.c.l.b16 %v153
    %v306 = vunpack.c.h.b16 %v153
    %v307 = vunpack.c.l.b16 %v154
    %v308 = vunpack.c.h.b16 %v154
    %v309 = vunpack.c.l.b16 %v155
    %v310 = vunpack.c.h.b16 %v155
    %v311 = vunpack.c.l.b16 %v156
    %v312 = vunpack.c.h.b16 %v156
    %v313 = vunpack.c.l.b16 %v157
    %v314 = vunpack.c.h.b16 %v157
    %v315 = vunpack.c.l.b16 %v158
    %v316 = vunpack.c.h.b16 %v158
    %v317 = vunpack.c.l.b16 %v159
    %v318 = vunpack.c.h.b16 %v159
    %v319 = vunpack.c.l.b16 %v160
    %v320 = vunpack.c.h.b16 %v160
    %v321 = vunpack.c.l.b16 %v161
    %v322 = vunpack.c.h.b16 %v161
    %v323 = vunpack.c.l.b16 %v162
    %v324 = vunpack.c.h.b16 %v162
    %v325 = vunpack.c.l.b16 %v163
    %v326 = vunpack.c.h.b16 %v163
    %v327 = vunpack.c.l.b16 %v164
    %v328 = vunpack.c.h.b16 %v164
    %v329 = vunpack.c.l.b16 %v165
    %v330 = vunpack.c.h.b16 %v165
    %v331 = vunpack.c.l.b16 %v166
    %v332 = vunpack.c.h.b16 %v166
    %v333 = vunpack.c.l.b16 %v167
    %v334 = vunpack.c.h.b16 %v167
    %v335 = vunpack.c.l.b16 %v168
    %v336 = vunpack.c.h.b16 %v168
    %v337 = vunpack.c.l.b16 %v169
    %v338 = vunpack.c.h.b16 %v169
    %v339 = vunpack.c.l.b16 %v170
    %v340 = vunpack.c.h.b16 %v170
    %v341 = vunpack.c.l.b16 %v171
    %v342 = vunpack.c.h.b16 %v171
    %v343 = vunpack.c.l.b16 %v172
    %v344 = vunpack.c.h.b16 %v172
    %v345 = vunpack.c.l.b16 %v173
    %v346 = vunpack.c.h.b16 %v173
    %v347 = vunpack.c.l.b16 %v174
    %v348 = vunpack.c.h.b16 %v174
    %v349 = vunpack.c.l.b16 %v175
    %v350 = vunpack.c.h.b16 %v175
    %v351 = vunpack.c.l.b16 %v176
    %v352 = vunpack.c.h.b16 %v176
    %v353 = vunpack.c.l.b16 %v177
    %v354 = vunpack.c.h.b16 %v177
    %v355 = vunpack.c.l.b16 %v178
    %v356 = vunpack.c.h.b16 %v178
    %v357 = vunpack.c.l.b16 %v179
    %v358 = vunpack.c.h.b16 %v179
    %v359 = vunpack.c.l.b16 %v180
    %v360 = vunpack.c.h.b16 %v180
    %v361 = vunpack.c.l.b16 %v181
    %v362 = vunpack.c.h.b16 %v181
    %v363 = vunpack.c.l.b16 %v182
    %v364 = vunpack.c.h.b16 %v182
    %v365 = vunpack.c.l.b16 %v183
    %v366 = vunpack.c.h.b16 %v183
    %v367 = vunpack.c.l.b16 %v184
    %v368 = vunpack.c.h.b16 %v184
    %v369 = vunpack.c.l.b16 %v185
    %v370 = vunpack.c.h.b16 %v185
    %v371 = vunpack.c.l.b16 %v186
    %v372 = vunpack.c.h.b16 %v186
    %v373 = vunpack.c.l.b16 %v187
    %v374 = vunpack.c.h.b16 %v187
    %v375 = vunpack.c.l.b16 %v188
    %v376 = vunpack.c.h.b16 %v188
    %v377 = vunpack.c.l.b16 %v189
    %v378 = vunpack.c.h.b16 %v189
    %v379 = vunpack.c.l.b16 %v190
    %v380 = vunpack.c.h.b16 %v190
    %v381 = vunpack.c.l.b16 %v191
    %v382 = vunpack.c.h.b16 %v191
    %v383 = vunpack.c.l.b16 %v192
    %v384 = vunpack.c.h.b16 %v192
    %v385 = vpack.c.b16 %v261, %v257
    %v386 = vpack.c.b16 %v262, %v258
    %v387 = vpack.c.b16 %v263, %v259
    %v388 = vpack.c.b16 %v264, %v260
    %v389 = vpack.c.b16 %v269, %v265
    %v390 = vpack.c.b16 %v270, %v266
    %v391 = vpack.c.b16 %v271, %v267
    %v392 = vpack.c.b16 %v272, %v268
    %v393 = vpack.c.b16 %v277, %v273
    %v394 = vpack.c.b16 %v278, %v274
    %v395 = vpack.c.b16 %v279, %v275
    %v396 = vpack.c.b16 %v280, %v276
    %v397 = vpack.c.b16 %v285, %v281
    %v398 = vpack.c.b16 %v286, %v282
    %v399 = vpack.c.b16 %v287, %v283
    %v400 = vpack.c.b16 %v288, %v284
    %v401 = vpack.c.b16 %v293, %v289
    %v402 = vpack.c.b16 %v294, %v290
    %v403 = vpack.c.b16 %v295, %v291
    %v404 = vpack.c.b16 %v296, %v292
    %v405 = vpack.c.b16 %v301, %v297
    %v406 = vpack.c.b16 %v302, %v298
    %v407 = vpack.c.b16 %v303, %v299
    %v408 = vpack.c.b16 %v304, %v300
    %v409 = vpack.c.b16 %v309, %v305
    %v410 = vpack.c.b16 %v310, %v306
    %v411 = vpack.c.b16 %v311, %v307
    %v412 = vpack.c.b16 %v312, %v308
    %v413 = vpack.c.b16 %v317, %v313
    %v414 = vpack.c.b16 %v318, %v314
    %v415 = vpack.c.b16 %v319, %v315
    %v416 = vpack.c.b16 %v320, %v316
    %v417 = vpack.c.b16 %v325, %v321
    %v418 = vpack.c.b16 %v326, %v322
    %v419 = vpack.c.b16 %v327, %v323
    %v420 = vpack.c.b16 %v328, %v324
    %v421 = vpack.c.b16 %v333, %v329
    %v422 = vpack.c.b16 %v334, %v330
    %v423 = vpack.c.b16 %v335, %v331
    %v424 = vpack.c.b16 %v336, %v332
    %v425 = vpack.c.b16 %v341, %v337
    %v426 = vpack.c.b16 %v342, %v338
    %v427 = vpack.c.b16 %v343, %v339
    %v428 = vpack.c.b16 %v344, %v340
    %v429 = vpack.c.b16 %v349, %v345
    %v430 = vpack.c.b16 %v350, %v346
    %v431 = vpack.c.b16 %v351, %v347
    %v432 = vpack.c.b16 %v352, %v348
    %v433 = vpack.c.b16 %v357, %v353
    %v434 = vpack.c.b16 %v358, %v354
    %v435 = vpack.c.b16 %v359, %v355
    %v436 = vpack.c.b16 %v360, %v356
    %v437 = vpack.c.b16 %v365, %v361
    %v438 = vpack.c.b16 %v366, %v362
    %v439 = vpack.c.b16 %v367, %v363
    %v440 = vpack.c.b16 %v368, %v364
    %v441 = vpack.c.b16 %v373, %v369
    %v442 = vpack.c.b16 %v374, %v370
    %v443 = vpack.c.b16 %v375, %v371
    %v444 = vpack.c.b16 %v376, %v372
    %v445 = vpack.c.b16 %v381, %v377
    %v446 = vpack.c.b16 %v382, %v378
    %v447 = vpack.c.b16 %v383, %v379
    %v448 = vpack.c.b16 %v384, %v380
    %513 = vmatprep.subr.bf16.mxu0 %v386
    %514 = vmatpush1.bf16.msra.mxu0 %v385
    %515 = vmatprep.subr.bf16.mxu0 %v390
    %516 = vmatpush1.bf16.msra.mxu0 %v389
    %517 = vmatprep.subr.bf16.mxu0 %v394
    %518 = vmatpush1.bf16.msra.mxu0 %v393
    %519 = vmatprep.subr.bf16.mxu0 %v398
    %520 = vmatpush1.bf16.msra.mxu0 %v397
    %521 = vmatprep.subr.bf16.mxu0 %v402
    %522 = vmatpush1.bf16.msra.mxu0 %v401
    %523 = vmatprep.subr.bf16.mxu0 %v406
    %524 = vmatpush1.bf16.msra.mxu0 %v405
    %525 = vmatprep.subr.bf16.mxu0 %v410
    %526 = vmatpush1.bf16.msra.mxu0 %v409
    %527 = vmatprep.subr.bf16.mxu0 %v414
    %528 = vmatpush1.bf16.msra.mxu0 %v413
    %529 = vmatprep.subr.bf16.mxu0 %v418
    %530 = vmatpush1.bf16.msra.mxu0 %v417
    %531 = vmatprep.subr.bf16.mxu0 %v422
    %532 = vmatpush1.bf16.msra.mxu0 %v421
    %533 = vmatprep.subr.bf16.mxu0 %v426
    %534 = vmatpush1.bf16.msra.mxu0 %v425
    %535 = vmatprep.subr.bf16.mxu0 %v430
    %536 = vmatpush1.bf16.msra.mxu0 %v429
    %537 = vmatprep.subr.bf16.mxu0 %v434
    %538 = vmatpush1.bf16.msra.mxu0 %v433
    %539 = vmatprep.subr.bf16.mxu0 %v438
    %540 = vmatpush1.bf16.msra.mxu0 %v437
    %541 = vmatprep.subr.bf16.mxu0 %v442
    %542 = vmatpush1.bf16.msra.mxu0 %v441
    %543 = vmatprep.subr.bf16.mxu0 %v446
    %544 = vmatpush1.bf16.msra.mxu0 %v445
    %545 = vmatprep.mubr.bf16.mxu0 %v124
    %546 = vmatmul.mubr.bf16.gmra.mrb[0].mxu0 %v123
    %v547 = vpop.f32.mrb[0].mxu0
    %v548 = vadd.f32 0.0, %v547
    %v549 = vpop.f32.mrb[0].mxu0
    %v550 = vadd.f32 0.0, %v549
    %v551 = vpop.f32.mrb[0].mxu0
    %v552 = vpop.f32.mrb[0].mxu0
    %553 = vdwg.mxu0
    %554 = vmatprep.subr.bf16.mxu0 %v388
    %555 = vmatpush1.bf16.msra.mxu0 %v387
    %556 = vmatprep.subr.bf16.mxu0 %v392
    %557 = vmatpush1.bf16.msra.mxu0 %v391
    %558 = vmatprep.subr.bf16.mxu0 %v396
    %559 = vmatpush1.bf16.msra.mxu0 %v395
    %560 = vmatprep.subr.bf16.mxu0 %v400
    %561 = vmatpush1.bf16.msra.mxu0 %v399
    %562 = vmatprep.subr.bf16.mxu0 %v404
    %563 = vmatpush1.bf16.msra.mxu0 %v403
    %564 = vmatprep.subr.bf16.mxu0 %v408
    %565 = vmatpush1.bf16.msra.mxu0 %v407
    %566 = vmatprep.subr.bf16.mxu0 %v412
    %567 = vmatpush1.bf16.msra.mxu0 %v411
    %568 = vmatprep.subr.bf16.mxu0 %v416
    %569 = vmatpush1.bf16.msra.mxu0 %v415
    %570 = vmatprep.subr.bf16.mxu0 %v420
    %571 = vmatpush1.bf16.msra.mxu0 %v419
    %572 = vmatprep.subr.bf16.mxu0 %v424
    %573 = vmatpush1.bf16.msra.mxu0 %v423
    %574 = vmatprep.subr.bf16.mxu0 %v428
    %575 = vmatpush1.bf16.msra.mxu0 %v427
    %576 = vmatprep.subr.bf16.mxu0 %v432
    %577 = vmatpush1.bf16.msra.mxu0 %v431
    %578 = vmatprep.subr.bf16.mxu0 %v436
    %579 = vmatpush1.bf16.msra.mxu0 %v435
    %580 = vmatprep.subr.bf16.mxu0 %v440
    %581 = vmatpush1.bf16.msra.mxu0 %v439
    %582 = vmatprep.subr.bf16.mxu0 %v444
    %583 = vmatpush1.bf16.msra.mxu0 %v443
    %584 = vmatprep.subr.bf16.mxu0 %v448
    %585 = vmatpush1.bf16.msra.mxu0 %v447
    %586 = vmatprep.mubr.bf16.mxu0 %v124
    %587 = vmatmul.mubr.bf16.gmra.mrb[0].mxu0 %v123
    %v588 = vpop.f32.mrb[0].mxu0
    %v589 = vadd.f32 0.0, %v588
    %v590 = vpop.f32.mrb[0].mxu0
    %v591 = vadd.f32 0.0, %v590
    %v592 = vpop.f32.mrb[0].mxu0
    %v593 = vpop.f32.mrb[0].mxu0
    %594 = vdwg.mxu0
    %v595 = vadd.f32 %v125, %v548
    %v596 = vadd.f32 %v126, %v550
    %v597 = vadd.f32 %v127, %v589
    %v598 = vadd.f32 %v128, %v591
    %599 = vst [vmem:[#allocation2] sm:$0xff] %v595
    %600 = vst [vmem:[#allocation2 + $0x8] sm:$0xff] %v596
    %601 = vst [vmem:[#allocation2 + $0x10] sm:$0xff] %v597
    %602 = vst [vmem:[#allocation2 + $0x18] sm:$0xff] %v598
    // Predicated region
    $region50: #{tpu_custom_call.1} parent=1 // pred_check
      %p603 = pneg %p83
    $region51: #{tpu_custom_call.1} parent=1 // pred_check_branch
      %605 = sbr.rel (%p603) target = $region53
    $region52: #{tpu_custom_call.1} parent=1 // pred_region
      %v606 = vld [vmem:[#allocation2] sm:$0xff]
      %v607 = vld [vmem:[#allocation2 + $0x8] sm:$0xff]
      %v608 = vld [vmem:[#allocation2 + $0x10] sm:$0xff]
      %v609 = vld [vmem:[#allocation2 + $0x18] sm:$0xff]
      %v610 = vld [vmem:[%s2] sm:$0xf]
      %v612 = vlaneseq
      %v613 = vshrl.u32 %v612, 7
      %v614 = vsub.s32 0, %v613
      %v615 = vrot.slane %v610, %v614
      %v616 = vlaneseq
      %v617 = vshrl.u32 %v616, 7
      %v618 = vsub.s32 1, %v617
      %v619 = vrot.slane %v610, %v618
      %v620 = vlaneseq
      %v621 = vshrl.u32 %v620, 7
      %v622 = vsub.s32 2, %v621
      %v623 = vrot.slane %v610, %v622
      %v624 = vlaneseq
      %v625 = vshrl.u32 %v624, 7
      %v626 = vsub.s32 3, %v625
      %v627 = vrot.slane %v610, %v626
      %v632 = vadd.f32 %v606, %v615
      %v633 = vadd.f32 %v607, %v619
      %v634 = vadd.f32 %v608, %v623
      %v635 = vadd.f32 %v609, %v627
      %v636 = vmax.f32 %v632, 0.0
      %v637 = vmax.f32 %v633, 0.0
      %v638 = vmax.f32 %v634, 0.0
      %v639 = vmax.f32 %v635, 0.0
      %v640 = vpack.c.bf16 %v636, %v636
      %v641 = vpack.c.bf16 %v637, %v637
      %v642 = vpack.c.bf16 %v638, %v638
      %v643 = vpack.c.bf16 %v639, %v639
      %v644 = vld [vmem:[#allocation8] sm:$0xff]
      %v645 = vld [vmem:[#allocation8 + $0x8] sm:$0xff]
      %v646 = vld [vmem:[#allocation8 + $0x10] sm:$0xff]
      %v647 = vld [vmem:[#allocation8 + $0x18] sm:$0xff]
      %v648 = vld [vmem:[#allocation8 + $0x20] sm:$0xff]
      %v649 = vld [vmem:[#allocation8 + $0x28] sm:$0xff]
      %v650 = vld [vmem:[#allocation8 + $0x30] sm:$0xff]
      %v651 = vld [vmem:[#allocation8 + $0x38] sm:$0xff]
      %v652 = vld [vmem:[#allocation8 + $0x40] sm:$0xff]
      %v653 = vld [vmem:[#allocation8 + $0x48] sm:$0xff]
      %v654 = vld [vmem:[#allocation8 + $0x50] sm:$0xff]
      %v655 = vld [vmem:[#allocation8 + $0x58] sm:$0xff]
      %v656 = vld [vmem:[#allocation8 + $0x60] sm:$0xff]
      %v657 = vld [vmem:[#allocation8 + $0x68] sm:$0xff]
      %v658 = vld [vmem:[#allocation8 + $0x70] sm:$0xff]
      %v659 = vld [vmem:[#allocation8 + $0x78] sm:$0xff]
      %v660 = vld [vmem:[#allocation8 + $0x80] sm:$0xff]
      %v661 = vld [vmem:[#allocation8 + $0x88] sm:$0xff]
      %v662 = vld [vmem:[#allocation8 + $0x90] sm:$0xff]
      %v663 = vld [vmem:[#allocation8 + $0x98] sm:$0xff]
      %v664 = vld [vmem:[#allocation8 + $0xa0] sm:$0xff]
      %v665 = vld [vmem:[#allocation8 + $0xa8] sm:$0xff]
      %v666 = vld [vmem:[#allocation8 + $0xb0] sm:$0xff]
      %v667 = vld [vmem:[#allocation8 + $0xb8] sm:$0xff]
      %v668 = vld [vmem:[#allocation8 + $0xc0] sm:$0xff]
      %v669 = vld [vmem:[#allocation8 + $0xc8] sm:$0xff]
      %v670 = vld [vmem:[#allocation8 + $0xd0] sm:$0xff]
      %v671 = vld [vmem:[#allocation8 + $0xd8] sm:$0xff]
      %v672 = vld [vmem:[#allocation8 + $0xe0] sm:$0xff]
      %v673 = vld [vmem:[#allocation8 + $0xe8] sm:$0xff]
      %v674 = vld [vmem:[#allocation8 + $0xf0] sm:$0xff]
      %v675 = vld [vmem:[#allocation8 + $0xf8] sm:$0xff]
      %v676 = vld [vmem:[#allocation8 + $0x100] sm:$0xff]
      %v677 = vld [vmem:[#allocation8 + $0x108] sm:$0xff]
      %v678 = vld [vmem:[#allocation8 + $0x110] sm:$0xff]
      %v679 = vld [vmem:[#allocation8 + $0x118] sm:$0xff]
      %v680 = vld [vmem:[#allocation8 + $0x120] sm:$0xff]
      %v681 = vld [vmem:[#allocation8 + $0x128] sm:$0xff]
      %v682 = vld [vmem:[#allocation8 + $0x130] sm:$0xff]
      %v683 = vld [vmem:[#allocation8 + $0x138] sm:$0xff]
      %v684 = vld [vmem:[#allocation8 + $0x140] sm:$0xff]
      %v685 = vld [vmem:[#allocation8 + $0x148] sm:$0xff]
      %v686 = vld [vmem:[#allocation8 + $0x150] sm:$0xff]
      %v687 = vld [vmem:[#allocation8 + $0x158] sm:$0xff]
      %v688 = vld [vmem:[#allocation8 + $0x160] sm:$0xff]
      %v689 = vld [vmem:[#allocation8 + $0x168] sm:$0xff]
      %v690 = vld [vmem:[#allocation8 + $0x170] sm:$0xff]
      %v691 = vld [vmem:[#allocation8 + $0x178] sm:$0xff]
      %v692 = vld [vmem:[#allocation8 + $0x180] sm:$0xff]
      %v693 = vld [vmem:[#allocation8 + $0x188] sm:$0xff]
      %v694 = vld [vmem:[#allocation8 + $0x190] sm:$0xff]
      %v695 = vld [vmem:[#allocation8 + $0x198] sm:$0xff]
      %v696 = vld [vmem:[#allocation8 + $0x1a0] sm:$0xff]
      %v697 = vld [vmem:[#allocation8 + $0x1a8] sm:$0xff]
      %v698 = vld [vmem:[#allocation8 + $0x1b0] sm:$0xff]
      %v699 = vld [vmem:[#allocation8 + $0x1b8] sm:$0xff]
      %v700 = vld [vmem:[#allocation8 + $0x1c0] sm:$0xff]
      %v701 = vld [vmem:[#allocation8 + $0x1c8] sm:$0xff]
      %v702 = vld [vmem:[#allocation8 + $0x1d0] sm:$0xff]
      %v703 = vld [vmem:[#allocation8 + $0x1d8] sm:$0xff]
      %v704 = vld [vmem:[#allocation8 + $0x1e0] sm:$0xff]
      %v705 = vld [vmem:[#allocation8 + $0x1e8] sm:$0xff]
      %v706 = vld [vmem:[#allocation8 + $0x1f0] sm:$0xff]
      %v707 = vld [vmem:[#allocation8 + $0x1f8] sm:$0xff]
      %v708 = vld [vmem:[#allocation8 + $0x200] sm:$0xff]
      %v709 = vld [vmem:[#allocation8 + $0x208] sm:$0xff]
      %v710 = vld [vmem:[#allocation8 + $0x210] sm:$0xff]
      %v711 = vld [vmem:[#allocation8 + $0x218] sm:$0xff]
      %v712 = vld [vmem:[#allocation8 + $0x220] sm:$0xff]
      %v713 = vld [vmem:[#allocation8 + $0x228] sm:$0xff]
      %v714 = vld [vmem:[#allocation8 + $0x230] sm:$0xff]
      %v715 = vld [vmem:[#allocation8 + $0x238] sm:$0xff]
      %v716 = vld [vmem:[#allocation8 + $0x240] sm:$0xff]
      %v717 = vld [vmem:[#allocation8 + $0x248] sm:$0xff]
      %v718 = vld [vmem:[#allocation8 + $0x250] sm:$0xff]
      %v719 = vld [vmem:[#allocation8 + $0x258] sm:$0xff]
      %v720 = vld [vmem:[#allocation8 + $0x260] sm:$0xff]
      %v721 = vld [vmem:[#allocation8 + $0x268] sm:$0xff]
      %v722 = vld [vmem:[#allocation8 + $0x270] sm:$0xff]
      %v723 = vld [vmem:[#allocation8 + $0x278] sm:$0xff]
      %v724 = vld [vmem:[#allocation8 + $0x280] sm:$0xff]
      %v725 = vld [vmem:[#allocation8 + $0x288] sm:$0xff]
      %v726 = vld [vmem:[#allocation8 + $0x290] sm:$0xff]
      %v727 = vld [vmem:[#allocation8 + $0x298] sm:$0xff]
      %v728 = vld [vmem:[#allocation8 + $0x2a0] sm:$0xff]
      %v729 = vld [vmem:[#allocation8 + $0x2a8] sm:$0xff]
      %v730 = vld [vmem:[#allocation8 + $0x2b0] sm:$0xff]
      %v731 = vld [vmem:[#allocation8 + $0x2b8] sm:$0xff]
      %v732 = vld [vmem:[#allocation8 + $0x2c0] sm:$0xff]
      %v733 = vld [vmem:[#allocation8 + $0x2c8] sm:$0xff]
      %v734 = vld [vmem:[#allocation8 + $0x2d0] sm:$0xff]
      %v735 = vld [vmem:[#allocation8 + $0x2d8] sm:$0xff]
      %v736 = vld [vmem:[#allocation8 + $0x2e0] sm:$0xff]
      %v737 = vld [vmem:[#allocation8 + $0x2e8] sm:$0xff]
      %v738 = vld [vmem:[#allocation8 + $0x2f0] sm:$0xff]
      %v739 = vld [vmem:[#allocation8 + $0x2f8] sm:$0xff]
      %v740 = vld [vmem:[#allocation8 + $0x300] sm:$0xff]
      %v741 = vld [vmem:[#allocation8 + $0x308] sm:$0xff]
      %v742 = vld [vmem:[#allocation8 + $0x310] sm:$0xff]
      %v743 = vld [vmem:[#allocation8 + $0x318] sm:$0xff]
      %v744 = vld [vmem:[#allocation8 + $0x320] sm:$0xff]
      %v745 = vld [vmem:[#allocation8 + $0x328] sm:$0xff]
      %v746 = vld [vmem:[#allocation8 + $0x330] sm:$0xff]
      %v747 = vld [vmem:[#allocation8 + $0x338] sm:$0xff]
      %v748 = vld [vmem:[#allocation8 + $0x340] sm:$0xff]
      %v749 = vld [vmem:[#allocation8 + $0x348] sm:$0xff]
      %v750 = vld [vmem:[#allocation8 + $0x350] sm:$0xff]
      %v751 = vld [vmem:[#allocation8 + $0x358] sm:$0xff]
      %v752 = vld [vmem:[#allocation8 + $0x360] sm:$0xff]
      %v753 = vld [vmem:[#allocation8 + $0x368] sm:$0xff]
      %v754 = vld [vmem:[#allocation8 + $0x370] sm:$0xff]
      %v755 = vld [vmem:[#allocation8 + $0x378] sm:$0xff]
      %v756 = vld [vmem:[#allocation8 + $0x380] sm:$0xff]
      %v757 = vld [vmem:[#allocation8 + $0x388] sm:$0xff]
      %v758 = vld [vmem:[#allocation8 + $0x390] sm:$0xff]
      %v759 = vld [vmem:[#allocation8 + $0x398] sm:$0xff]
      %v760 = vld [vmem:[#allocation8 + $0x3a0] sm:$0xff]
      %v761 = vld [vmem:[#allocation8 + $0x3a8] sm:$0xff]
      %v762 = vld [vmem:[#allocation8 + $0x3b0] sm:$0xff]
      %v763 = vld [vmem:[#allocation8 + $0x3b8] sm:$0xff]
      %v764 = vld [vmem:[#allocation8 + $0x3c0] sm:$0xff]
      %v765 = vld [vmem:[#allocation8 + $0x3c8] sm:$0xff]
      %v766 = vld [vmem:[#allocation8 + $0x3d0] sm:$0xff]
      %v767 = vld [vmem:[#allocation8 + $0x3d8] sm:$0xff]
      %v768 = vld [vmem:[#allocation8 + $0x3e0] sm:$0xff]
      %v769 = vld [vmem:[#allocation8 + $0x3e8] sm:$0xff]
      %v770 = vld [vmem:[#allocation8 + $0x3f0] sm:$0xff]
      %v771 = vld [vmem:[#allocation8 + $0x3f8] sm:$0xff]
      %v772 = vld [vmem:[#allocation8 + $0x400] sm:$0xff]
      %v773 = vld [vmem:[#allocation8 + $0x408] sm:$0xff]
      %v774 = vld [vmem:[#allocation8 + $0x410] sm:$0xff]
      %v775 = vld [vmem:[#allocation8 + $0x418] sm:$0xff]
      %v776 = vld [vmem:[#allocation8 + $0x420] sm:$0xff]
      %v777 = vld [vmem:[#allocation8 + $0x428] sm:$0xff]
      %v778 = vld [vmem:[#allocation8 + $0x430] sm:$0xff]
      %v779 = vld [vmem:[#allocation8 + $0x438] sm:$0xff]
      %v780 = vld [vmem:[#allocation8 + $0x440] sm:$0xff]
      %v781 = vld [vmem:[#allocation8 + $0x448] sm:$0xff]
      %v782 = vld [vmem:[#allocation8 + $0x450] sm:$0xff]
      %v783 = vld [vmem:[#allocation8 + $0x458] sm:$0xff]
      %v784 = vld [vmem:[#allocation8 + $0x460] sm:$0xff]
      %v785 = vld [vmem:[#allocation8 + $0x468] sm:$0xff]
      %v786 = vld [vmem:[#allocation8 + $0x470] sm:$0xff]
      %v787 = vld [vmem:[#allocation8 + $0x478] sm:$0xff]
      %v788 = vld [vmem:[#allocation8 + $0x480] sm:$0xff]
      %v789 = vld [vmem:[#allocation8 + $0x488] sm:$0xff]
      %v790 = vld [vmem:[#allocation8 + $0x490] sm:$0xff]
      %v791 = vld [vmem:[#allocation8 + $0x498] sm:$0xff]
      %v792 = vld [vmem:[#allocation8 + $0x4a0] sm:$0xff]
      %v793 = vld [vmem:[#allocation8 + $0x4a8] sm:$0xff]
      %v794 = vld [vmem:[#allocation8 + $0x4b0] sm:$0xff]
      %v795 = vld [vmem:[#allocation8 + $0x4b8] sm:$0xff]
      %v796 = vld [vmem:[#allocation8 + $0x4c0] sm:$0xff]
      %v797 = vld [vmem:[#allocation8 + $0x4c8] sm:$0xff]
      %v798 = vld [vmem:[#allocation8 + $0x4d0] sm:$0xff]
      %v799 = vld [vmem:[#allocation8 + $0x4d8] sm:$0xff]
      %v800 = vld [vmem:[#allocation8 + $0x4e0] sm:$0xff]
      %v801 = vld [vmem:[#allocation8 + $0x4e8] sm:$0xff]
      %v802 = vld [vmem:[#allocation8 + $0x4f0] sm:$0xff]
      %v803 = vld [vmem:[#allocation8 + $0x4f8] sm:$0xff]
      %v804 = vld [vmem:[#allocation8 + $0x500] sm:$0xff]
      %v805 = vld [vmem:[#allocation8 + $0x508] sm:$0xff]
      %v806 = vld [vmem:[#allocation8 + $0x510] sm:$0xff]
      %v807 = vld [vmem:[#allocation8 + $0x518] sm:$0xff]
      %v808 = vld [vmem:[#allocation8 + $0x520] sm:$0xff]
      %v809 = vld [vmem:[#allocation8 + $0x528] sm:$0xff]
      %v810 = vld [vmem:[#allocation8 + $0x530] sm:$0xff]
      %v811 = vld [vmem:[#allocation8 + $0x538] sm:$0xff]
      %v812 = vld [vmem:[#allocation8 + $0x540] sm:$0xff]
      %v813 = vld [vmem:[#allocation8 + $0x548] sm:$0xff]
      %v814 = vld [vmem:[#allocation8 + $0x550] sm:$0xff]
      %v815 = vld [vmem:[#allocation8 + $0x558] sm:$0xff]
      %v816 = vld [vmem:[#allocation8 + $0x560] sm:$0xff]
      %v817 = vld [vmem:[#allocation8 + $0x568] sm:$0xff]
      %v818 = vld [vmem:[#allocation8 + $0x570] sm:$0xff]
      %v819 = vld [vmem:[#allocation8 + $0x578] sm:$0xff]
      %v820 = vld [vmem:[#allocation8 + $0x580] sm:$0xff]
      %v821 = vld [vmem:[#allocation8 + $0x588] sm:$0xff]
      %v822 = vld [vmem:[#allocation8 + $0x590] sm:$0xff]
      %v823 = vld [vmem:[#allocation8 + $0x598] sm:$0xff]
      %v824 = vld [vmem:[#allocation8 + $0x5a0] sm:$0xff]
      %v825 = vld [vmem:[#allocation8 + $0x5a8] sm:$0xff]
      %v826 = vld [vmem:[#allocation8 + $0x5b0] sm:$0xff]
      %v827 = vld [vmem:[#allocation8 + $0x5b8] sm:$0xff]
      %v828 = vld [vmem:[#allocation8 + $0x5c0] sm:$0xff]
      %v829 = vld [vmem:[#allocation8 + $0x5c8] sm:$0xff]
      %v830 = vld [vmem:[#allocation8 + $0x5d0] sm:$0xff]
      %v831 = vld [vmem:[#allocation8 + $0x5d8] sm:$0xff]
      %v832 = vld [vmem:[#allocation8 + $0x5e0] sm:$0xff]
      %v833 = vld [vmem:[#allocation8 + $0x5e8] sm:$0xff]
      %v834 = vld [vmem:[#allocation8 + $0x5f0] sm:$0xff]
      %v835 = vld [vmem:[#allocation8 + $0x5f8] sm:$0xff]
      %v836 = vld [vmem:[%s4] sm:$0x3f]
      %v838 = vlaneseq
      %v839 = vshrl.u32 %v838, 7
      %v840 = vsub.s32 0, %v839
      %v841 = vrot.slane %v836, %v840
      %v842 = vlaneseq
      %v843 = vshrl.u32 %v842, 7
      %v844 = vsub.s32 1, %v843
      %v845 = vrot.slane %v836, %v844
      %v846 = vlaneseq
      %v847 = vshrl.u32 %v846, 7
      %v848 = vsub.s32 2, %v847
      %v849 = vrot.slane %v836, %v848
      %v850 = vlaneseq
      %v851 = vshrl.u32 %v850, 7
      %v852 = vsub.s32 3, %v851
      %v853 = vrot.slane %v836, %v852
      %v854 = vlaneseq
      %v855 = vshrl.u32 %v854, 7
      %v856 = vsub.s32 4, %v855
      %v857 = vrot.slane %v836, %v856
      %v858 = vlaneseq
      %v859 = vshrl.u32 %v858, 7
      %v860 = vsub.s32 5, %v859
      %v861 = vrot.slane %v836, %v860
      %v1060 = vunpack.c.l.b16 %v644
      %v1061 = vunpack.c.h.b16 %v644
      %v1062 = vunpack.c.l.b16 %v645
      %v1063 = vunpack.c.h.b16 %v645
      %v1064 = vunpack.c.l.b16 %v646
      %v1065 = vunpack.c.h.b16 %v646
      %v1066 = vunpack.c.l.b16 %v647
      %v1067 = vunpack.c.h.b16 %v647
      %v1068 = vunpack.c.l.b16 %v648
      %v1069 = vunpack.c.h.b16 %v648
      %v1070 = vunpack.c.l.b16 %v649
      %v1071 = vunpack.c.h.b16 %v649
      %v1072 = vunpack.c.l.b16 %v650
      %v1073 = vunpack.c.h.b16 %v650
      %v1074 = vunpack.c.l.b16 %v651
      %v1075 = vunpack.c.h.b16 %v651
      %v1076 = vunpack.c.l.b16 %v652
      %v1077 = vunpack.c.h.b16 %v652
      %v1078 = vunpack.c.l.b16 %v653
      %v1079 = vunpack.c.h.b16 %v653
      %v1080 = vunpack.c.l.b16 %v654
      %v1081 = vunpack.c.h.b16 %v654
      %v1082 = vunpack.c.l.b16 %v655
      %v1083 = vunpack.c.h.b16 %v655
      %v1084 = vunpack.c.l.b16 %v656
      %v1085 = vunpack.c.h.b16 %v656
      %v1086 = vunpack.c.l.b16 %v657
      %v1087 = vunpack.c.h.b16 %v657
      %v1088 = vunpack.c.l.b16 %v658
      %v1089 = vunpack.c.h.b16 %v658
      %v1090 = vunpack.c.l.b16 %v659
      %v1091 = vunpack.c.h.b16 %v659
      %v1092 = vunpack.c.l.b16 %v660
      %v1093 = vunpack.c.h.b16 %v660
      %v1094 = vunpack.c.l.b16 %v661
      %v1095 = vunpack.c.h.b16 %v661
      %v1096 = vunpack.c.l.b16 %v662
      %v1097 = vunpack.c.h.b16 %v662
      %v1098 = vunpack.c.l.b16 %v663
      %v1099 = vunpack.c.h.b16 %v663
      %v1100 = vunpack.c.l.b16 %v664
      %v1101 = vunpack.c.h.b16 %v664
      %v1102 = vunpack.c.l.b16 %v665
      %v1103 = vunpack.c.h.b16 %v665
      %v1104 = vunpack.c.l.b16 %v666
      %v1105 = vunpack.c.h.b16 %v666
      %v1106 = vunpack.c.l.b16 %v667
      %v1107 = vunpack.c.h.b16 %v667
      %v1108 = vunpack.c.l.b16 %v668
      %v1109 = vunpack.c.h.b16 %v668
      %v1110 = vunpack.c.l.b16 %v669
      %v1111 = vunpack.c.h.b16 %v669
      %v1112 = vunpack.c.l.b16 %v670
      %v1113 = vunpack.c.h.b16 %v670
      %v1114 = vunpack.c.l.b16 %v671
      %v1115 = vunpack.c.h.b16 %v671
      %v1116 = vunpack.c.l.b16 %v672
      %v1117 = vunpack.c.h.b16 %v672
      %v1118 = vunpack.c.l.b16 %v673
      %v1119 = vunpack.c.h.b16 %v673
      %v1120 = vunpack.c.l.b16 %v674
      %v1121 = vunpack.c.h.b16 %v674
      %v1122 = vunpack.c.l.b16 %v675
      %v1123 = vunpack.c.h.b16 %v675
      %v1124 = vunpack.c.l.b16 %v676
      %v1125 = vunpack.c.h.b16 %v676
      %v1126 = vunpack.c.l.b16 %v677
      %v1127 = vunpack.c.h.b16 %v677
      %v1128 = vunpack.c.l.b16 %v678
      %v1129 = vunpack.c.h.b16 %v678
      %v1130 = vunpack.c.l.b16 %v679
      %v1131 = vunpack.c.h.b16 %v679
      %v1132 = vunpack.c.l.b16 %v680
      %v1133 = vunpack.c.h.b16 %v680
      %v1134 = vunpack.c.l.b16 %v681
      %v1135 = vunpack.c.h.b16 %v681
      %v1136 = vunpack.c.l.b16 %v682
      %v1137 = vunpack.c.h.b16 %v682
      %v1138 = vunpack.c.l.b16 %v683
      %v1139 = vunpack.c.h.b16 %v683
      %v1140 = vunpack.c.l.b16 %v684
      %v1141 = vunpack.c.h.b16 %v684
      %v1142 = vunpack.c.l.b16 %v685
      %v1143 = vunpack.c.h.b16 %v685
      %v1144 = vunpack.c.l.b16 %v686
      %v1145 = vunpack.c.h.b16 %v686
      %v1146 = vunpack.c.l.b16 %v687
      %v1147 = vunpack.c.h.b16 %v687
      %v1148 = vunpack.c.l.b16 %v688
      %v1149 = vunpack.c.h.b16 %v688
      %v1150 = vunpack.c.l.b16 %v689
      %v1151 = vunpack.c.h.b16 %v689
      %v1152 = vunpack.c.l.b16 %v690
      %v1153 = vunpack.c.h.b16 %v690
      %v1154 = vunpack.c.l.b16 %v691
      %v1155 = vunpack.c.h.b16 %v691
      %v1156 = vunpack.c.l.b16 %v692
      %v1157 = vunpack.c.h.b16 %v692
      %v1158 = vunpack.c.l.b16 %v693
      %v1159 = vunpack.c.h.b16 %v693
      %v1160 = vunpack.c.l.b16 %v694
      %v1161 = vunpack.c.h.b16 %v694
      %v1162 = vunpack.c.l.b16 %v695
      %v1163 = vunpack.c.h.b16 %v695
      %v1164 = vunpack.c.l.b16 %v696
      %v1165 = vunpack.c.h.b16 %v696
      %v1166 = vunpack.c.l.b16 %v697
      %v1167 = vunpack.c.h.b16 %v697
      %v1168 = vunpack.c.l.b16 %v698
      %v1169 = vunpack.c.h.b16 %v698
      %v1170 = vunpack.c.l.b16 %v699
      %v1171 = vunpack.c.h.b16 %v699
      %v1172 = vunpack.c.l.b16 %v700
      %v1173 = vunpack.c.h.b16 %v700
      %v1174 = vunpack.c.l.b16 %v701
      %v1175 = vunpack.c.h.b16 %v701
      %v1176 = vunpack.c.l.b16 %v702
      %v1177 = vunpack.c.h.b16 %v702
      %v1178 = vunpack.c.l.b16 %v703
      %v1179 = vunpack.c.h.b16 %v703
      %v1180 = vunpack.c.l.b16 %v704
      %v1181 = vunpack.c.h.b16 %v704
      %v1182 = vunpack.c.l.b16 %v705
      %v1183 = vunpack.c.h.b16 %v705
      %v1184 = vunpack.c.l.b16 %v706
      %v1185 = vunpack.c.h.b16 %v706
      %v1186 = vunpack.c.l.b16 %v707
      %v1187 = vunpack.c.h.b16 %v707
      %v1188 = vunpack.c.l.b16 %v708
      %v1189 = vunpack.c.h.b16 %v708
      %v1190 = vunpack.c.l.b16 %v709
      %v1191 = vunpack.c.h.b16 %v709
      %v1192 = vunpack.c.l.b16 %v710
      %v1193 = vunpack.c.h.b16 %v710
      %v1194 = vunpack.c.l.b16 %v711
      %v1195 = vunpack.c.h.b16 %v711
      %v1196 = vunpack.c.l.b16 %v712
      %v1197 = vunpack.c.h.b16 %v712
      %v1198 = vunpack.c.l.b16 %v713
      %v1199 = vunpack.c.h.b16 %v713
      %v1200 = vunpack.c.l.b16 %v714
      %v1201 = vunpack.c.h.b16 %v714
      %v1202 = vunpack.c.l.b16 %v715
      %v1203 = vunpack.c.h.b16 %v715
      %v1204 = vunpack.c.l.b16 %v716
      %v1205 = vunpack.c.h.b16 %v716
      %v1206 = vunpack.c.l.b16 %v717
      %v1207 = vunpack.c.h.b16 %v717
      %v1208 = vunpack.c.l.b16 %v718
      %v1209 = vunpack.c.h.b16 %v718
      %v1210 = vunpack.c.l.b16 %v719
      %v1211 = vunpack.c.h.b16 %v719
      %v1212 = vunpack.c.l.b16 %v720
      %v1213 = vunpack.c.h.b16 %v720
      %v1214 = vunpack.c.l.b16 %v721
      %v1215 = vunpack.c.h.b16 %v721
      %v1216 = vunpack.c.l.b16 %v722
      %v1217 = vunpack.c.h.b16 %v722
      %v1218 = vunpack.c.l.b16 %v723
      %v1219 = vunpack.c.h.b16 %v723
      %v1220 = vunpack.c.l.b16 %v724
      %v1221 = vunpack.c.h.b16 %v724
      %v1222 = vunpack.c.l.b16 %v725
      %v1223 = vunpack.c.h.b16 %v725
      %v1224 = vunpack.c.l.b16 %v726
      %v1225 = vunpack.c.h.b16 %v726
      %v1226 = vunpack.c.l.b16 %v727
      %v1227 = vunpack.c.h.b16 %v727
      %v1228 = vunpack.c.l.b16 %v728
      %v1229 = vunpack.c.h.b16 %v728
      %v1230 = vunpack.c.l.b16 %v729
      %v1231 = vunpack.c.h.b16 %v729
      %v1232 = vunpack.c.l.b16 %v730
      %v1233 = vunpack.c.h.b16 %v730
      %v1234 = vunpack.c.l.b16 %v731
      %v1235 = vunpack.c.h.b16 %v731
      %v1236 = vunpack.c.l.b16 %v732
      %v1237 = vunpack.c.h.b16 %v732
      %v1238 = vunpack.c.l.b16 %v733
      %v1239 = vunpack.c.h.b16 %v733
      %v1240 = vunpack.c.l.b16 %v734
      %v1241 = vunpack.c.h.b16 %v734
      %v1242 = vunpack.c.l.b16 %v735
      %v1243 = vunpack.c.h.b16 %v735
      %v1244 = vunpack.c.l.b16 %v736
      %v1245 = vunpack.c.h.b16 %v736
      %v1246 = vunpack.c.l.b16 %v737
      %v1247 = vunpack.c.h.b16 %v737
      %v1248 = vunpack.c.l.b16 %v738
      %v1249 = vunpack.c.h.b16 %v738
      %v1250 = vunpack.c.l.b16 %v739
      %v1251 = vunpack.c.h.b16 %v739
      %v1252 = vunpack.c.l.b16 %v740
      %v1253 = vunpack.c.h.b16 %v740
      %v1254 = vunpack.c.l.b16 %v741
      %v1255 = vunpack.c.h.b16 %v741
      %v1256 = vunpack.c.l.b16 %v742
      %v1257 = vunpack.c.h.b16 %v742
      %v1258 = vunpack.c.l.b16 %v743
      %v1259 = vunpack.c.h.b16 %v743
      %v1260 = vunpack.c.l.b16 %v744
      %v1261 = vunpack.c.h.b16 %v744
      %v1262 = vunpack.c.l.b16 %v745
      %v1263 = vunpack.c.h.b16 %v745
      %v1264 = vunpack.c.l.b16 %v746
      %v1265 = vunpack.c.h.b16 %v746
      %v1266 = vunpack.c.l.b16 %v747
      %v1267 = vunpack.c.h.b16 %v747
      %v1268 = vunpack.c.l.b16 %v748
      %v1269 = vunpack.c.h.b16 %v748
      %v1270 = vunpack.c.l.b16 %v749
      %v1271 = vunpack.c.h.b16 %v749
      %v1272 = vunpack.c.l.b16 %v750
      %v1273 = vunpack.c.h.b16 %v750
      %v1274 = vunpack.c.l.b16 %v751
      %v1275 = vunpack.c.h.b16 %v751
      %v1276 = vunpack.c.l.b16 %v752
      %v1277 = vunpack.c.h.b16 %v752
      %v1278 = vunpack.c.l.b16 %v753
      %v1279 = vunpack.c.h.b16 %v753
      %v1280 = vunpack.c.l.b16 %v754
      %v1281 = vunpack.c.h.b16 %v754
      %v1282 = vunpack.c.l.b16 %v755
      %v1283 = vunpack.c.h.b16 %v755
      %v1284 = vunpack.c.l.b16 %v756
      %v1285 = vunpack.c.h.b16 %v756
      %v1286 = vunpack.c.l.b16 %v757
      %v1287 = vunpack.c.h.b16 %v757
      %v1288 = vunpack.c.l.b16 %v758
      %v1289 = vunpack.c.h.b16 %v758
      %v1290 = vunpack.c.l.b16 %v759
      %v1291 = vunpack.c.h.b16 %v759
      %v1292 = vunpack.c.l.b16 %v760
      %v1293 = vunpack.c.h.b16 %v760
      %v1294 = vunpack.c.l.b16 %v761
      %v1295 = vunpack.c.h.b16 %v761
      %v1296 = vunpack.c.l.b16 %v762
      %v1297 = vunpack.c.h.b16 %v762
      %v1298 = vunpack.c.l.b16 %v763
      %v1299 = vunpack.c.h.b16 %v763
      %v1300 = vunpack.c.l.b16 %v764
      %v1301 = vunpack.c.h.b16 %v764
      %v1302 = vunpack.c.l.b16 %v765
      %v1303 = vunpack.c.h.b16 %v765
      %v1304 = vunpack.c.l.b16 %v766
      %v1305 = vunpack.c.h.b16 %v766
      %v1306 = vunpack.c.l.b16 %v767
      %v1307 = vunpack.c.h.b16 %v767
      %v1308 = vunpack.c.l.b16 %v768
      %v1309 = vunpack.c.h.b16 %v768
      %v1310 = vunpack.c.l.b16 %v769
      %v1311 = vunpack.c.h.b16 %v769
      %v1312 = vunpack.c.l.b16 %v770
      %v1313 = vunpack.c.h.b16 %v770
      %v1314 = vunpack.c.l.b16 %v771
      %v1315 = vunpack.c.h.b16 %v771
      %v1316 = vunpack.c.l.b16 %v772
      %v1317 = vunpack.c.h.b16 %v772
      %v1318 = vunpack.c.l.b16 %v773
      %v1319 = vunpack.c.h.b16 %v773
      %v1320 = vunpack.c.l.b16 %v774
      %v1321 = vunpack.c.h.b16 %v774
      %v1322 = vunpack.c.l.b16 %v775
      %v1323 = vunpack.c.h.b16 %v775
      %v1324 = vunpack.c.l.b16 %v776
      %v1325 = vunpack.c.h.b16 %v776
      %v1326 = vunpack.c.l.b16 %v777
      %v1327 = vunpack.c.h.b16 %v777
      %v1328 = vunpack.c.l.b16 %v778
      %v1329 = vunpack.c.h.b16 %v778
      %v1330 = vunpack.c.l.b16 %v779
      %v1331 = vunpack.c.h.b16 %v779
      %v1332 = vunpack.c.l.b16 %v780
      %v1333 = vunpack.c.h.b16 %v780
      %v1334 = vunpack.c.l.b16 %v781
      %v1335 = vunpack.c.h.b16 %v781
      %v1336 = vunpack.c.l.b16 %v782
      %v1337 = vunpack.c.h.b16 %v782
      %v1338 = vunpack.c.l.b16 %v783
      %v1339 = vunpack.c.h.b16 %v783
      %v1340 = vunpack.c.l.b16 %v784
      %v1341 = vunpack.c.h.b16 %v784
      %v1342 = vunpack.c.l.b16 %v785
      %v1343 = vunpack.c.h.b16 %v785
      %v1344 = vunpack.c.l.b16 %v786
      %v1345 = vunpack.c.h.b16 %v786
      %v1346 = vunpack.c.l.b16 %v787
      %v1347 = vunpack.c.h.b16 %v787
      %v1348 = vunpack.c.l.b16 %v788
      %v1349 = vunpack.c.h.b16 %v788
      %v1350 = vunpack.c.l.b16 %v789
      %v1351 = vunpack.c.h.b16 %v789
      %v1352 = vunpack.c.l.b16 %v790
      %v1353 = vunpack.c.h.b16 %v790
      %v1354 = vunpack.c.l.b16 %v791
      %v1355 = vunpack.c.h.b16 %v791
      %v1356 = vunpack.c.l.b16 %v792
      %v1357 = vunpack.c.h.b16 %v792
      %v1358 = vunpack.c.l.b16 %v793
      %v1359 = vunpack.c.h.b16 %v793
      %v1360 = vunpack.c.l.b16 %v794
      %v1361 = vunpack.c.h.b16 %v794
      %v1362 = vunpack.c.l.b16 %v795
      %v1363 = vunpack.c.h.b16 %v795
      %v1364 = vunpack.c.l.b16 %v796
      %v1365 = vunpack.c.h.b16 %v796
      %v1366 = vunpack.c.l.b16 %v797
      %v1367 = vunpack.c.h.b16 %v797
      %v1368 = vunpack.c.l.b16 %v798
      %v1369 = vunpack.c.h.b16 %v798
      %v1370 = vunpack.c.l.b16 %v799
      %v1371 = vunpack.c.h.b16 %v799
      %v1372 = vunpack.c.l.b16 %v800
      %v1373 = vunpack.c.h.b16 %v800
      %v1374 = vunpack.c.l.b16 %v801
      %v1375 = vunpack.c.h.b16 %v801
      %v1376 = vunpack.c.l.b16 %v802
      %v1377 = vunpack.c.h.b16 %v802
      %v1378 = vunpack.c.l.b16 %v803
      %v1379 = vunpack.c.h.b16 %v803
      %v1380 = vunpack.c.l.b16 %v804
      %v1381 = vunpack.c.h.b16 %v804
      %v1382 = vunpack.c.l.b16 %v805
      %v1383 = vunpack.c.h.b16 %v805
      %v1384 = vunpack.c.l.b16 %v806
      %v1385 = vunpack.c.h.b16 %v806
      %v1386 = vunpack.c.l.b16 %v807
      %v1387 = vunpack.c.h.b16 %v807
      %v1388 = vunpack.c.l.b16 %v808
      %v1389 = vunpack.c.h.b16 %v808
      %v1390 = vunpack.c.l.b16 %v809
      %v1391 = vunpack.c.h.b16 %v809
      %v1392 = vunpack.c.l.b16 %v810
      %v1393 = vunpack.c.h.b16 %v810
      %v1394 = vunpack.c.l.b16 %v811
      %v1395 = vunpack.c.h.b16 %v811
      %v1396 = vunpack.c.l.b16 %v812
      %v1397 = vunpack.c.h.b16 %v812
      %v1398 = vunpack.c.l.b16 %v813
      %v1399 = vunpack.c.h.b16 %v813
      %v1400 = vunpack.c.l.b16 %v814
      %v1401 = vunpack.c.h.b16 %v814
      %v1402 = vunpack.c.l.b16 %v815
      %v1403 = vunpack.c.h.b16 %v815
      %v1404 = vunpack.c.l.b16 %v816
      %v1405 = vunpack.c.h.b16 %v816
      %v1406 = vunpack.c.l.b16 %v817
      %v1407 = vunpack.c.h.b16 %v817
      %v1408 = vunpack.c.l.b16 %v818
      %v1409 = vunpack.c.h.b16 %v818
      %v1410 = vunpack.c.l.b16 %v819
      %v1411 = vunpack.c.h.b16 %v819
      %v1412 = vunpack.c.l.b16 %v820
      %v1413 = vunpack.c.h.b16 %v820
      %v1414 = vunpack.c.l.b16 %v821
      %v1415 = vunpack.c.h.b16 %v821
      %v1416 = vunpack.c.l.b16 %v822
      %v1417 = vunpack.c.h.b16 %v822
      %v1418 = vunpack.c.l.b16 %v823
      %v1419 = vunpack.c.h.b16 %v823
      %v1420 = vunpack.c.l.b16 %v824
      %v1421 = vunpack.c.h.b16 %v824
      %v1422 = vunpack.c.l.b16 %v825
      %v1423 = vunpack.c.h.b16 %v825
      %v1424 = vunpack.c.l.b16 %v826
      %v1425 = vunpack.c.h.b16 %v826
      %v1426 = vunpack.c.l.b16 %v827
      %v1427 = vunpack.c.h.b16 %v827
      %v1428 = vunpack.c.l.b16 %v828
      %v1429 = vunpack.c.h.b16 %v828
      %v1430 = vunpack.c.l.b16 %v829
      %v1431 = vunpack.c.h.b16 %v829
      %v1432 = vunpack.c.l.b16 %v830
      %v1433 = vunpack.c.h.b16 %v830
      %v1434 = vunpack.c.l.b16 %v831
      %v1435 = vunpack.c.h.b16 %v831
      %v1436 = vunpack.c.l.b16 %v832
      %v1437 = vunpack.c.h.b16 %v832
      %v1438 = vunpack.c.l.b16 %v833
      %v1439 = vunpack.c.h.b16 %v833
      %v1440 = vunpack.c.l.b16 %v834
      %v1441 = vunpack.c.h.b16 %v834
      %v1442 = vunpack.c.l.b16 %v835
      %v1443 = vunpack.c.h.b16 %v835
      %v1444 = vpack.c.b16 %v1066, %v1060
      %v1445 = vpack.c.b16 %v1067, %v1061
      %v1446 = vpack.c.b16 %v1068, %v1062
      %v1447 = vpack.c.b16 %v1069, %v1063
      %v1448 = vpack.c.b16 %v1070, %v1064
      %v1449 = vpack.c.b16 %v1071, %v1065
      %v1450 = vpack.c.b16 %v1078, %v1072
      %v1451 = vpack.c.b16 %v1079, %v1073
      %v1452 = vpack.c.b16 %v1080, %v1074
      %v1453 = vpack.c.b16 %v1081, %v1075
      %v1454 = vpack.c.b16 %v1082, %v1076
      %v1455 = vpack.c.b16 %v1083, %v1077
      %v1456 = vpack.c.b16 %v1090, %v1084
      %v1457 = vpack.c.b16 %v1091, %v1085
      %v1458 = vpack.c.b16 %v1092, %v1086
      %v1459 = vpack.c.b16 %v1093, %v1087
      %v1460 = vpack.c.b16 %v1094, %v1088
      %v1461 = vpack.c.b16 %v1095, %v1089
      %v1462 = vpack.c.b16 %v1102, %v1096
      %v1463 = vpack.c.b16 %v1103, %v1097
      %v1464 = vpack.c.b16 %v1104, %v1098
      %v1465 = vpack.c.b16 %v1105, %v1099
      %v1466 = vpack.c.b16 %v1106, %v1100
      %v1467 = vpack.c.b16 %v1107, %v1101
      %v1468 = vpack.c.b16 %v1114, %v1108
      %v1469 = vpack.c.b16 %v1115, %v1109
      %v1470 = vpack.c.b16 %v1116, %v1110
      %v1471 = vpack.c.b16 %v1117, %v1111
      %v1472 = vpack.c.b16 %v1118, %v1112
      %v1473 = vpack.c.b16 %v1119, %v1113
      %v1474 = vpack.c.b16 %v1126, %v1120
      %v1475 = vpack.c.b16 %v1127, %v1121
      %v1476 = vpack.c.b16 %v1128, %v1122
      %v1477 = vpack.c.b16 %v1129, %v1123
      %v1478 = vpack.c.b16 %v1130, %v1124
      %v1479 = vpack.c.b16 %v1131, %v1125
      %v1480 = vpack.c.b16 %v1138, %v1132
      %v1481 = vpack.c.b16 %v1139, %v1133
      %v1482 = vpack.c.b16 %v1140, %v1134
      %v1483 = vpack.c.b16 %v1141, %v1135
      %v1484 = vpack.c.b16 %v1142, %v1136
      %v1485 = vpack.c.b16 %v1143, %v1137
      %v1486 = vpack.c.b16 %v1150, %v1144
      %v1487 = vpack.c.b16 %v1151, %v1145
      %v1488 = vpack.c.b16 %v1152, %v1146
      %v1489 = vpack.c.b16 %v1153, %v1147
      %v1490 = vpack.c.b16 %v1154, %v1148
      %v1491 = vpack.c.b16 %v1155, %v1149
      %v1492 = vpack.c.b16 %v1162, %v1156
      %v1493 = vpack.c.b16 %v1163, %v1157
      %v1494 = vpack.c.b16 %v1164, %v1158
      %v1495 = vpack.c.b16 %v1165, %v1159
      %v1496 = vpack.c.b16 %v1166, %v1160
      %v1497 = vpack.c.b16 %v1167, %v1161
      %v1498 = vpack.c.b16 %v1174, %v1168
      %v1499 = vpack.c.b16 %v1175, %v1169
      %v1500 = vpack.c.b16 %v1176, %v1170
      %v1501 = vpack.c.b16 %v1177, %v1171
      %v1502 = vpack.c.b16 %v1178, %v1172
      %v1503 = vpack.c.b16 %v1179, %v1173
      %v1504 = vpack.c.b16 %v1186, %v1180
      %v1505 = vpack.c.b16 %v1187, %v1181
      %v1506 = vpack.c.b16 %v1188, %v1182
      %v1507 = vpack.c.b16 %v1189, %v1183
      %v1508 = vpack.c.b16 %v1190, %v1184
      %v1509 = vpack.c.b16 %v1191, %v1185
      %v1510 = vpack.c.b16 %v1198, %v1192
      %v1511 = vpack.c.b16 %v1199, %v1193
      %v1512 = vpack.c.b16 %v1200, %v1194
      %v1513 = vpack.c.b16 %v1201, %v1195
      %v1514 = vpack.c.b16 %v1202, %v1196
      %v1515 = vpack.c.b16 %v1203, %v1197
      %v1516 = vpack.c.b16 %v1210, %v1204
      %v1517 = vpack.c.b16 %v1211, %v1205
      %v1518 = vpack.c.b16 %v1212, %v1206
      %v1519 = vpack.c.b16 %v1213, %v1207
      %v1520 = vpack.c.b16 %v1214, %v1208
      %v1521 = vpack.c.b16 %v1215, %v1209
      %v1522 = vpack.c.b16 %v1222, %v1216
      %v1523 = vpack.c.b16 %v1223, %v1217
      %v1524 = vpack.c.b16 %v1224, %v1218
      %v1525 = vpack.c.b16 %v1225, %v1219
      %v1526 = vpack.c.b16 %v1226, %v1220
      %v1527 = vpack.c.b16 %v1227, %v1221
      %v1528 = vpack.c.b16 %v1234, %v1228
      %v1529 = vpack.c.b16 %v1235, %v1229
      %v1530 = vpack.c.b16 %v1236, %v1230
      %v1531 = vpack.c.b16 %v1237, %v1231
      %v1532 = vpack.c.b16 %v1238, %v1232
      %v1533 = vpack.c.b16 %v1239, %v1233
      %v1534 = vpack.c.b16 %v1246, %v1240
      %v1535 = vpack.c.b16 %v1247, %v1241
      %v1536 = vpack.c.b16 %v1248, %v1242
      %v1537 = vpack.c.b16 %v1249, %v1243
      %v1538 = vpack.c.b16 %v1250, %v1244
      %v1539 = vpack.c.b16 %v1251, %v1245
      %v1540 = vpack.c.b16 %v1258, %v1252
      %v1541 = vpack.c.b16 %v1259, %v1253
      %v1542 = vpack.c.b16 %v1260, %v1254
      %v1543 = vpack.c.b16 %v1261, %v1255
      %v1544 = vpack.c.b16 %v1262, %v1256
      %v1545 = vpack.c.b16 %v1263, %v1257
      %v1546 = vpack.c.b16 %v1270, %v1264
      %v1547 = vpack.c.b16 %v1271, %v1265
      %v1548 = vpack.c.b16 %v1272, %v1266
      %v1549 = vpack.c.b16 %v1273, %v1267
      %v1550 = vpack.c.b16 %v1274, %v1268
      %v1551 = vpack.c.b16 %v1275, %v1269
      %v1552 = vpack.c.b16 %v1282, %v1276
      %v1553 = vpack.c.b16 %v1283, %v1277
      %v1554 = vpack.c.b16 %v1284, %v1278
      %v1555 = vpack.c.b16 %v1285, %v1279
      %v1556 = vpack.c.b16 %v1286, %v1280
      %v1557 = vpack.c.b16 %v1287, %v1281
      %v1558 = vpack.c.b16 %v1294, %v1288
      %v1559 = vpack.c.b16 %v1295, %v1289
      %v1560 = vpack.c.b16 %v1296, %v1290
      %v1561 = vpack.c.b16 %v1297, %v1291
      %v1562 = vpack.c.b16 %v1298, %v1292
      %v1563 = vpack.c.b16 %v1299, %v1293
      %v1564 = vpack.c.b16 %v1306, %v1300
      %v1565 = vpack.c.b16 %v1307, %v1301
      %v1566 = vpack.c.b16 %v1308, %v1302
      %v1567 = vpack.c.b16 %v1309, %v1303
      %v1568 = vpack.c.b16 %v1310, %v1304
      %v1569 = vpack.c.b16 %v1311, %v1305
      %v1570 = vpack.c.b16 %v1318, %v1312
      %v1571 = vpack.c.b16 %v1319, %v1313
      %v1572 = vpack.c.b16 %v1320, %v1314
      %v1573 = vpack.c.b16 %v1321, %v1315
      %v1574 = vpack.c.b16 %v1322, %v1316
      %v1575 = vpack.c.b16 %v1323, %v1317
      %v1576 = vpack.c.b16 %v1330, %v1324
      %v1577 = vpack.c.b16 %v1331, %v1325
      %v1578 = vpack.c.b16 %v1332, %v1326
      %v1579 = vpack.c.b16 %v1333, %v1327
      %v1580 = vpack.c.b16 %v1334, %v1328
      %v1581 = vpack.c.b16 %v1335, %v1329
      %v1582 = vpack.c.b16 %v1342, %v1336
      %v1583 = vpack.c.b16 %v1343, %v1337
      %v1584 = vpack.c.b16 %v1344, %v1338
      %v1585 = vpack.c.b16 %v1345, %v1339
      %v1586 = vpack.c.b16 %v1346, %v1340
      %v1587 = vpack.c.b16 %v1347, %v1341
      %v1588 = vpack.c.b16 %v1354, %v1348
      %v1589 = vpack.c.b16 %v1355, %v1349
      %v1590 = vpack.c.b16 %v1356, %v1350
      %v1591 = vpack.c.b16 %v1357, %v1351
      %v1592 = vpack.c.b16 %v1358, %v1352
      %v1593 = vpack.c.b16 %v1359, %v1353
      %v1594 = vpack.c.b16 %v1366, %v1360
      %v1595 = vpack.c.b16 %v1367, %v1361
      %v1596 = vpack.c.b16 %v1368, %v1362
      %v1597 = vpack.c.b16 %v1369, %v1363
      %v1598 = vpack.c.b16 %v1370, %v1364
      %v1599 = vpack.c.b16 %v1371, %v1365
      %v1600 = vpack.c.b16 %v1378, %v1372
      %v1601 = vpack.c.b16 %v1379, %v1373
      %v1602 = vpack.c.b16 %v1380, %v1374
      %v1603 = vpack.c.b16 %v1381, %v1375
      %v1604 = vpack.c.b16 %v1382, %v1376
      %v1605 = vpack.c.b16 %v1383, %v1377
      %v1606 = vpack.c.b16 %v1390, %v1384
      %v1607 = vpack.c.b16 %v1391, %v1385
      %v1608 = vpack.c.b16 %v1392, %v1386
      %v1609 = vpack.c.b16 %v1393, %v1387
      %v1610 = vpack.c.b16 %v1394, %v1388
      %v1611 = vpack.c.b16 %v1395, %v1389
      %v1612 = vpack.c.b16 %v1402, %v1396
      %v1613 = vpack.c.b16 %v1403, %v1397
      %v1614 = vpack.c.b16 %v1404, %v1398
      %v1615 = vpack.c.b16 %v1405, %v1399
      %v1616 = vpack.c.b16 %v1406, %v1400
      %v1617 = vpack.c.b16 %v1407, %v1401
      %v1618 = vpack.c.b16 %v1414, %v1408
      %v1619 = vpack.c.b16 %v1415, %v1409
      %v1620 = vpack.c.b16 %v1416, %v1410
      %v1621 = vpack.c.b16 %v1417, %v1411
      %v1622 = vpack.c.b16 %v1418, %v1412
      %v1623 = vpack.c.b16 %v1419, %v1413
      %v1624 = vpack.c.b16 %v1426, %v1420
      %v1625 = vpack.c.b16 %v1427, %v1421
      %v1626 = vpack.c.b16 %v1428, %v1422
      %v1627 = vpack.c.b16 %v1429, %v1423
      %v1628 = vpack.c.b16 %v1430, %v1424
      %v1629 = vpack.c.b16 %v1431, %v1425
      %v1630 = vpack.c.b16 %v1438, %v1432
      %v1631 = vpack.c.b16 %v1439, %v1433
      %v1632 = vpack.c.b16 %v1440, %v1434
      %v1633 = vpack.c.b16 %v1441, %v1435
      %v1634 = vpack.c.b16 %v1442, %v1436
      %v1635 = vpack.c.b16 %v1443, %v1437
      %1828 = vmatprep.subr.bf16.mxu0 %v1445
      %1829 = vmatpush1.bf16.msra.mxu0 %v1444
      %1830 = vmatprep.subr.bf16.mxu0 %v1451
      %1831 = vmatpush1.bf16.msra.mxu0 %v1450
      %1832 = vmatprep.subr.bf16.mxu0 %v1457
      %1833 = vmatpush1.bf16.msra.mxu0 %v1456
      %1834 = vmatprep.subr.bf16.mxu0 %v1463
      %1835 = vmatpush1.bf16.msra.mxu0 %v1462
      %1836 = vmatprep.subr.bf16.mxu0 %v1469
      %1837 = vmatpush1.bf16.msra.mxu0 %v1468
      %1838 = vmatprep.subr.bf16.mxu0 %v1475
      %1839 = vmatpush1.bf16.msra.mxu0 %v1474
      %1840 = vmatprep.subr.bf16.mxu0 %v1481
      %1841 = vmatpush1.bf16.msra.mxu0 %v1480
      %1842 = vmatprep.subr.bf16.mxu0 %v1487
      %1843 = vmatpush1.bf16.msra.mxu0 %v1486
      %1844 = vmatprep.subr.bf16.mxu0 %v1493
      %1845 = vmatpush1.bf16.msra.mxu0 %v1492
      %1846 = vmatprep.subr.bf16.mxu0 %v1499
      %1847 = vmatpush1.bf16.msra.mxu0 %v1498
      %1848 = vmatprep.subr.bf16.mxu0 %v1505
      %1849 = vmatpush1.bf16.msra.mxu0 %v1504
      %1850 = vmatprep.subr.bf16.mxu0 %v1511
      %1851 = vmatpush1.bf16.msra.mxu0 %v1510
      %1852 = vmatprep.subr.bf16.mxu0 %v1517
      %1853 = vmatpush1.bf16.msra.mxu0 %v1516
      %1854 = vmatprep.subr.bf16.mxu0 %v1523
      %1855 = vmatpush1.bf16.msra.mxu0 %v1522
      %1856 = vmatprep.subr.bf16.mxu0 %v1529
      %1857 = vmatpush1.bf16.msra.mxu0 %v1528
      %1858 = vmatprep.subr.bf16.mxu0 %v1535
      %1859 = vmatpush1.bf16.msra.mxu0 %v1534
      %1860 = vmatprep.mubr.bf16.mxu0 %v641
      %1861 = vmatmul.mubr.bf16.gmra.mrb[0].mxu0 %v640
      %v1862 = vpop.f32.mrb[0].mxu0
      %v1863 = vadd.f32 %v841, %v1862
      %v1864 = vpop.f32.mrb[0].mxu0
      %v1865 = vadd.f32 %v845, %v1864
      %v1866 = vpop.f32.mrb[0].mxu0
      %v1867 = vpop.f32.mrb[0].mxu0
      %1868 = vdwg.mxu0
      %1869 = vmatprep.subr.bf16.mxu0 %v1541
      %1870 = vmatpush1.bf16.msra.mxu0 %v1540
      %1871 = vmatprep.subr.bf16.mxu0 %v1547
      %1872 = vmatpush1.bf16.msra.mxu0 %v1546
      %1873 = vmatprep.subr.bf16.mxu0 %v1553
      %1874 = vmatpush1.bf16.msra.mxu0 %v1552
      %1875 = vmatprep.subr.bf16.mxu0 %v1559
      %1876 = vmatpush1.bf16.msra.mxu0 %v1558
      %1877 = vmatprep.subr.bf16.mxu0 %v1565
      %1878 = vmatpush1.bf16.msra.mxu0 %v1564
      %1879 = vmatprep.subr.bf16.mxu0 %v1571
      %1880 = vmatpush1.bf16.msra.mxu0 %v1570
      %1881 = vmatprep.subr.bf16.mxu0 %v1577
      %1882 = vmatpush1.bf16.msra.mxu0 %v1576
      %1883 = vmatprep.subr.bf16.mxu0 %v1583
      %1884 = vmatpush1.bf16.msra.mxu0 %v1582
      %1885 = vmatprep.subr.bf16.mxu0 %v1589
      %1886 = vmatpush1.bf16.msra.mxu0 %v1588
      %1887 = vmatprep.subr.bf16.mxu0 %v1595
      %1888 = vmatpush1.bf16.msra.mxu0 %v1594
      %1889 = vmatprep.subr.bf16.mxu0 %v1601
      %1890 = vmatpush1.bf16.msra.mxu0 %v1600
      %1891 = vmatprep.subr.bf16.mxu0 %v1607
      %1892 = vmatpush1.bf16.msra.mxu0 %v1606
      %1893 = vmatprep.subr.bf16.mxu0 %v1613
      %1894 = vmatpush1.bf16.msra.mxu0 %v1612
      %1895 = vmatprep.subr.bf16.mxu0 %v1619
      %1896 = vmatpush1.bf16.msra.mxu0 %v1618
      %1897 = vmatprep.subr.bf16.mxu0 %v1625
      %1898 = vmatpush1.bf16.msra.mxu0 %v1624
      %1899 = vmatprep.subr.bf16.mxu0 %v1631
      %1900 = vmatpush1.bf16.msra.mxu0 %v1630
      %1901 = vmatprep.mubr.bf16.mxu0 %v643
      %1902 = vmatmul.mubr.bf16.gmra.mrb[0].mxu0 %v642
      %v1903 = vpop.f32.mrb[0].mxu0
      %v1904 = vadd.f32 %v1863, %v1903
      %v1905 = vpop.f32.mrb[0].mxu0
      %v1906 = vadd.f32 %v1865, %v1905
      %v1907 = vpop.f32.mrb[0].mxu0
      %v1908 = vpop.f32.mrb[0].mxu0
      %1909 = vdwg.mxu0
      %1910 = vmatprep.subr.bf16.mxu0 %v1447
      %1911 = vmatpush1.bf16.msra.mxu0 %v1446
      %1912 = vmatprep.subr.bf16.mxu0 %v1453
      %1913 = vmatpush1.bf16.msra.mxu0 %v1452
      %1914 = vmatprep.subr.bf16.mxu0 %v1459
      %1915 = vmatpush1.bf16.msra.mxu0 %v1458
      %1916 = vmatprep.subr.bf16.mxu0 %v1465
      %1917 = vmatpush1.bf16.msra.mxu0 %v1464
      %1918 = vmatprep.subr.bf16.mxu0 %v1471
      %1919 = vmatpush1.bf16.msra.mxu0 %v1470
      %1920 = vmatprep.subr.bf16.mxu0 %v1477
      %1921 = vmatpush1.bf16.msra.mxu0 %v1476
      %1922 = vmatprep.subr.bf16.mxu0 %v1483
      %1923 = vmatpush1.bf16.msra.mxu0 %v1482
      %1924 = vmatprep.subr.bf16.mxu0 %v1489
      %1925 = vmatpush1.bf16.msra.mxu0 %v1488
      %1926 = vmatprep.subr.bf16.mxu0 %v1495
      %1927 = vmatpush1.bf16.msra.mxu0 %v1494
      %1928 = vmatprep.subr.bf16.mxu0 %v1501
      %1929 = vmatpush1.bf16.msra.mxu0 %v1500
      %1930 = vmatprep.subr.bf16.mxu0 %v1507
      %1931 = vmatpush1.bf16.msra.mxu0 %v1506
      %1932 = vmatprep.subr.bf16.mxu0 %v1513
      %1933 = vmatpush1.bf16.msra.mxu0 %v1512
      %1934 = vmatprep.subr.bf16.mxu0 %v1519
      %1935 = vmatpush1.bf16.msra.mxu0 %v1518
      %1936 = vmatprep.subr.bf16.mxu0 %v1525
      %1937 = vmatpush1.bf16.msra.mxu0 %v1524
      %1938 = vmatprep.subr.bf16.mxu0 %v1531
      %1939 = vmatpush1.bf16.msra.mxu0 %v1530
      %1940 = vmatprep.subr.bf16.mxu0 %v1537
      %1941 = vmatpush1.bf16.msra.mxu0 %v1536
      %1942 = vmatprep.mubr.bf16.mxu0 %v641
      %1943 = vmatmul.mubr.bf16.gmra.mrb[0].mxu0 %v640
      %v1944 = vpop.f32.mrb[0].mxu0
      %v1945 = vadd.f32 %v849, %v1944
      %v1946 = vpop.f32.mrb[0].mxu0
      %v1947 = vadd.f32 %v853, %v1946
      %v1948 = vpop.f32.mrb[0].mxu0
      %v1949 = vpop.f32.mrb[0].mxu0
      %1950 = vdwg.mxu0
      %1951 = vmatprep.subr.bf16.mxu0 %v1543
      %1952 = vmatpush1.bf16.msra.mxu0 %v1542
      %1953 = vmatprep.subr.bf16.mxu0 %v1549
      %1954 = vmatpush1.bf16.msra.mxu0 %v1548
      %1955 = vmatprep.subr.bf16.mxu0 %v1555
      %1956 = vmatpush1.bf16.msra.mxu0 %v1554
      %1957 = vmatprep.subr.bf16.mxu0 %v1561
      %1958 = vmatpush1.bf16.msra.mxu0 %v1560
      %1959 = vmatprep.subr.bf16.mxu0 %v1567
      %1960 = vmatpush1.bf16.msra.mxu0 %v1566
      %1961 = vmatprep.subr.bf16.mxu0 %v1573
      %1962 = vmatpush1.bf16.msra.mxu0 %v1572
      %1963 = vmatprep.subr.bf16.mxu0 %v1579
      %1964 = vmatpush1.bf16.msra.mxu0 %v1578
      %1965 = vmatprep.subr.bf16.mxu0 %v1585
      %1966 = vmatpush1.bf16.msra.mxu0 %v1584
      %1967 = vmatprep.subr.bf16.mxu0 %v1591
      %1968 = vmatpush1.bf16.msra.mxu0 %v1590
      %1969 = vmatprep.subr.bf16.mxu0 %v1597
      %1970 = vmatpush1.bf16.msra.mxu0 %v1596
      %1971 = vmatprep.subr.bf16.mxu0 %v1603
      %1972 = vmatpush1.bf16.msra.mxu0 %v1602
      %1973 = vmatprep.subr.bf16.mxu0 %v1609
      %1974 = vmatpush1.bf16.msra.mxu0 %v1608
      %1975 = vmatprep.subr.bf16.mxu0 %v1615
      %1976 = vmatpush1.bf16.msra.mxu0 %v1614
      %1977 = vmatprep.subr.bf16.mxu0 %v1621
      %1978 = vmatpush1.bf16.msra.mxu0 %v1620
      %1979 = vmatprep.subr.bf16.mxu0 %v1627
      %1980 = vmatpush1.bf16.msra.mxu0 %v1626
      %1981 = vmatprep.subr.bf16.mxu0 %v1633
      %1982 = vmatpush1.bf16.msra.mxu0 %v1632
      %1983 = vmatprep.mubr.bf16.mxu0 %v643
      %1984 = vmatmul.mubr.bf16.gmra.mrb[0].mxu0 %v642
      %v1985 = vpop.f32.mrb[0].mxu0
      %v1986 = vadd.f32 %v1945, %v1985
      %v1987 = vpop.f32.mrb[0].mxu0
      %v1988 = vadd.f32 %v1947, %v1987
      %v1989 = vpop.f32.mrb[0].mxu0
      %v1990 = vpop.f32.mrb[0].mxu0
      %1991 = vdwg.mxu0
      %1992 = vmatprep.subr.bf16.mxu0 %v1449
      %1993 = vmatpush1.bf16.msra.mxu0 %v1448
      %1994 = vmatprep.subr.bf16.mxu0 %v1455
      %1995 = vmatpush1.bf16.msra.mxu0 %v1454
      %1996 = vmatprep.subr.bf16.mxu0 %v1461
      %1997 = vmatpush1.bf16.msra.mxu0 %v1460
      %1998 = vmatprep.subr.bf16.mxu0 %v1467
      %1999 = vmatpush1.bf16.msra.mxu0 %v1466
      %2000 = vmatprep.subr.bf16.mxu0 %v1473
      %2001 = vmatpush1.bf16.msra.mxu0 %v1472
      %2002 = vmatprep.subr.bf16.mxu0 %v1479
      %2003 = vmatpush1.bf16.msra.mxu0 %v1478
      %2004 = vmatprep.subr.bf16.mxu0 %v1485
      %2005 = vmatpush1.bf16.msra.mxu0 %v1484
      %2006 = vmatprep.subr.bf16.mxu0 %v1491
      %2007 = vmatpush1.bf16.msra.mxu0 %v1490
      %2008 = vmatprep.subr.bf16.mxu0 %v1497
      %2009 = vmatpush1.bf16.msra.mxu0 %v1496
      %2010 = vmatprep.subr.bf16.mxu0 %v1503
      %2011 = vmatpush1.bf16.msra.mxu0 %v1502
      %2012 = vmatprep.subr.bf16.mxu0 %v1509
      %2013 = vmatpush1.bf16.msra.mxu0 %v1508
      %2014 = vmatprep.subr.bf16.mxu0 %v1515
      %2015 = vmatpush1.bf16.msra.mxu0 %v1514
      %2016 = vmatprep.subr.bf16.mxu0 %v1521
      %2017 = vmatpush1.bf16.msra.mxu0 %v1520
      %2018 = vmatprep.subr.bf16.mxu0 %v1527
      %2019 = vmatpush1.bf16.msra.mxu0 %v1526
      %2020 = vmatprep.subr.bf16.mxu0 %v1533
      %2021 = vmatpush1.bf16.msra.mxu0 %v1532
      %2022 = vmatprep.subr.bf16.mxu0 %v1539
      %2023 = vmatpush1.bf16.msra.mxu0 %v1538
      %2024 = vmatprep.mubr.bf16.mxu0 %v641
      %2025 = vmatmul.mubr.bf16.gmra.mrb[0].mxu0 %v640
      %v2026 = vpop.f32.mrb[0].mxu0
      %v2027 = vadd.f32 %v857, %v2026
      %v2028 = vpop.f32.mrb[0].mxu0
      %v2029 = vadd.f32 %v861, %v2028
      %v2030 = vpop.f32.mrb[0].mxu0
      %v2031 = vpop.f32.mrb[0].mxu0
      %2032 = vdwg.mxu0
      %2033 = vmatprep.subr.bf16.mxu0 %v1545
      %2034 = vmatpush1.bf16.msra.mxu0 %v1544
      %2035 = vmatprep.subr.bf16.mxu0 %v1551
      %2036 = vmatpush1.bf16.msra.mxu0 %v1550
      %2037 = vmatprep.subr.bf16.mxu0 %v1557
      %2038 = vmatpush1.bf16.msra.mxu0 %v1556
      %2039 = vmatprep.subr.bf16.mxu0 %v1563
      %2040 = vmatpush1.bf16.msra.mxu0 %v1562
      %2041 = vmatprep.subr.bf16.mxu0 %v1569
      %2042 = vmatpush1.bf16.msra.mxu0 %v1568
      %2043 = vmatprep.subr.bf16.mxu0 %v1575
      %2044 = vmatpush1.bf16.msra.mxu0 %v1574
      %2045 = vmatprep.subr.bf16.mxu0 %v1581
      %2046 = vmatpush1.bf16.msra.mxu0 %v1580
      %2047 = vmatprep.subr.bf16.mxu0 %v1587
      %2048 = vmatpush1.bf16.msra.mxu0 %v1586
      %2049 = vmatprep.subr.bf16.mxu0 %v1593
      %2050 = vmatpush1.bf16.msra.mxu0 %v1592
      %2051 = vmatprep.subr.bf16.mxu0 %v1599
      %2052 = vmatpush1.bf16.msra.mxu0 %v1598
      %2053 = vmatprep.subr.bf16.mxu0 %v1605
      %2054 = vmatpush1.bf16.msra.mxu0 %v1604
      %2055 = vmatprep.subr.bf16.mxu0 %v1611
      %2056 = vmatpush1.bf16.msra.mxu0 %v1610
      %2057 = vmatprep.subr.bf16.mxu0 %v1617
      %2058 = vmatpush1.bf16.msra.mxu0 %v1616
      %2059 = vmatprep.subr.bf16.mxu0 %v1623
      %2060 = vmatpush1.bf16.msra.mxu0 %v1622
      %2061 = vmatprep.subr.bf16.mxu0 %v1629
      %2062 = vmatpush1.bf16.msra.mxu0 %v1628
      %2063 = vmatprep.subr.bf16.mxu0 %v1635
      %2064 = vmatpush1.bf16.msra.mxu0 %v1634
      %2065 = vmatprep.mubr.bf16.mxu0 %v643
      %2066 = vmatmul.mubr.bf16.gmra.mrb[0].mxu0 %v642
      %v2067 = vpop.f32.mrb[0].mxu0
      %v2068 = vadd.f32 %v2027, %v2067
      %v2069 = vpop.f32.mrb[0].mxu0
      %v2070 = vadd.f32 %v2029, %v2069
      %v2071 = vpop.f32.mrb[0].mxu0
      %v2072 = vpop.f32.mrb[0].mxu0
      %2073 = vdwg.mxu0
      %v2074 = vmax.f32 %v1904, 0.0
      %v2075 = vmax.f32 %v1906, 0.0
      %v2076 = vmax.f32 %v1986, 0.0
      %v2077 = vmax.f32 %v1988, 0.0
      %v2078 = vmax.f32 %v2068, 0.0
      %v2079 = vmax.f32 %v2070, 0.0
      %v2080 = vpack.c.bf16 %v2074, %v2074
      %v2081 = vpack.c.bf16 %v2075, %v2075
      %v2082 = vpack.c.bf16 %v2076, %v2076
      %v2083 = vpack.c.bf16 %v2077, %v2077
      %v2084 = vpack.c.bf16 %v2078, %v2078
      %v2085 = vpack.c.bf16 %v2079, %v2079
      %v2086 = vld [vmem:[#allocation9] sm:$0xf]
      %v2087 = vld [vmem:[#allocation9 + $0x4] sm:$0xf]
      %v2088 = vld [vmem:[#allocation9 + $0x8] sm:$0xf]
      %v2089 = vld [vmem:[#allocation9 + $0xc] sm:$0xf]
      %v2090 = vld [vmem:[#allocation9 + $0x10] sm:$0xf]
      %v2091 = vld [vmem:[#allocation9 + $0x14] sm:$0xf]
      %v2092 = vld [vmem:[#allocation9 + $0x18] sm:$0xf]
      %v2093 = vld [vmem:[#allocation9 + $0x1c] sm:$0xf]
      %v2094 = vld [vmem:[#allocation9 + $0x20] sm:$0xf]
      %v2095 = vld [vmem:[#allocation9 + $0x24] sm:$0xf]
      %v2096 = vld [vmem:[#allocation9 + $0x28] sm:$0xf]
      %v2097 = vld [vmem:[#allocation9 + $0x2c] sm:$0xf]
      %v2098 = vld [vmem:[#allocation9 + $0x30] sm:$0xf]
      %v2099 = vld [vmem:[#allocation9 + $0x34] sm:$0xf]
      %v2100 = vld [vmem:[#allocation9 + $0x38] sm:$0xf]
      %v2101 = vld [vmem:[#allocation9 + $0x3c] sm:$0xf]
      %v2102 = vld [vmem:[#allocation9 + $0x40] sm:$0xf]
      %v2103 = vld [vmem:[#allocation9 + $0x44] sm:$0xf]
      %v2104 = vld [vmem:[#allocation9 + $0x48] sm:$0xf]
      %v2105 = vld [vmem:[#allocation9 + $0x4c] sm:$0xf]
      %v2106 = vld [vmem:[#allocation9 + $0x50] sm:$0xf]
      %v2107 = vld [vmem:[#allocation9 + $0x54] sm:$0xf]
      %v2108 = vld [vmem:[#allocation9 + $0x58] sm:$0xf]
      %v2109 = vld [vmem:[#allocation9 + $0x5c] sm:$0xf]
      %v2110 = vld [vmem:[#allocation9 + $0x60] sm:$0xf]
      %v2111 = vld [vmem:[#allocation9 + $0x64] sm:$0xf]
      %v2112 = vld [vmem:[#allocation9 + $0x68] sm:$0xf]
      %v2113 = vld [vmem:[#allocation9 + $0x6c] sm:$0xf]
      %v2114 = vld [vmem:[#allocation9 + $0x70] sm:$0xf]
      %v2115 = vld [vmem:[#allocation9 + $0x74] sm:$0xf]
      %v2116 = vld [vmem:[#allocation9 + $0x78] sm:$0xf]
      %v2117 = vld [vmem:[#allocation9 + $0x7c] sm:$0xf]
      %v2118 = vld [vmem:[#allocation9 + $0x80] sm:$0xf]
      %v2119 = vld [vmem:[#allocation9 + $0x84] sm:$0xf]
      %v2120 = vld [vmem:[#allocation9 + $0x88] sm:$0xf]
      %v2121 = vld [vmem:[#allocation9 + $0x8c] sm:$0xf]
      %v2122 = vld [vmem:[#allocation9 + $0x90] sm:$0xf]
      %v2123 = vld [vmem:[#allocation9 + $0x94] sm:$0xf]
      %v2124 = vld [vmem:[#allocation9 + $0x98] sm:$0xf]
      %v2125 = vld [vmem:[#allocation9 + $0x9c] sm:$0xf]
      %v2126 = vld [vmem:[#allocation9 + $0xa0] sm:$0xf]
      %v2127 = vld [vmem:[#allocation9 + $0xa4] sm:$0xf]
      %v2128 = vld [vmem:[#allocation9 + $0xa8] sm:$0xf]
      %v2129 = vld [vmem:[#allocation9 + $0xac] sm:$0xf]
      %v2130 = vld [vmem:[#allocation9 + $0xb0] sm:$0xf]
      %v2131 = vld [vmem:[#allocation9 + $0xb4] sm:$0xf]
      %v2132 = vld [vmem:[#allocation9 + $0xb8] sm:$0xf]
      %v2133 = vld [vmem:[#allocation9 + $0xbc] sm:$0xf]
      %v2134 = vld [vmem:[#allocation9 + $0xc0] sm:$0xf]
      %v2135 = vld [vmem:[#allocation9 + $0xc4] sm:$0xf]
      %v2136 = vld [vmem:[#allocation9 + $0xc8] sm:$0xf]
      %v2137 = vld [vmem:[#allocation9 + $0xcc] sm:$0xf]
      %v2138 = vld [vmem:[#allocation9 + $0xd0] sm:$0xf]
      %v2139 = vld [vmem:[#allocation9 + $0xd4] sm:$0xf]
      %v2140 = vld [vmem:[#allocation9 + $0xd8] sm:$0xf]
      %v2141 = vld [vmem:[#allocation9 + $0xdc] sm:$0xf]
      %v2142 = vld [vmem:[#allocation9 + $0xe0] sm:$0xf]
      %v2143 = vld [vmem:[#allocation9 + $0xe4] sm:$0xf]
      %v2144 = vld [vmem:[#allocation9 + $0xe8] sm:$0xf]
      %v2145 = vld [vmem:[#allocation9 + $0xec] sm:$0xf]
      %v2146 = vld [vmem:[#allocation9 + $0xf0] sm:$0xf]
      %v2147 = vld [vmem:[#allocation9 + $0xf4] sm:$0xf]
      %v2148 = vld [vmem:[#allocation9 + $0xf8] sm:$0xf]
      %v2149 = vld [vmem:[#allocation9 + $0xfc] sm:$0xf]
      %v2150 = vld [vmem:[#allocation9 + $0x100] sm:$0xf]
      %v2151 = vld [vmem:[#allocation9 + $0x104] sm:$0xf]
      %v2152 = vld [vmem:[#allocation9 + $0x108] sm:$0xf]
      %v2153 = vld [vmem:[#allocation9 + $0x10c] sm:$0xf]
      %v2154 = vld [vmem:[#allocation9 + $0x110] sm:$0xf]
      %v2155 = vld [vmem:[#allocation9 + $0x114] sm:$0xf]
      %v2156 = vld [vmem:[#allocation9 + $0x118] sm:$0xf]
      %v2157 = vld [vmem:[#allocation9 + $0x11c] sm:$0xf]
      %v2158 = vld [vmem:[#allocation9 + $0x120] sm:$0xf]
      %v2159 = vld [vmem:[#allocation9 + $0x124] sm:$0xf]
      %v2160 = vld [vmem:[#allocation9 + $0x128] sm:$0xf]
      %v2161 = vld [vmem:[#allocation9 + $0x12c] sm:$0xf]
      %v2162 = vld [vmem:[#allocation9 + $0x130] sm:$0xf]
      %v2163 = vld [vmem:[#allocation9 + $0x134] sm:$0xf]
      %v2164 = vld [vmem:[#allocation9 + $0x138] sm:$0xf]
      %v2165 = vld [vmem:[#allocation9 + $0x13c] sm:$0xf]
      %v2166 = vld [vmem:[#allocation9 + $0x140] sm:$0xf]
      %v2167 = vld [vmem:[#allocation9 + $0x144] sm:$0xf]
      %v2168 = vld [vmem:[#allocation9 + $0x148] sm:$0xf]
      %v2169 = vld [vmem:[#allocation9 + $0x14c] sm:$0xf]
      %v2170 = vld [vmem:[#allocation9 + $0x150] sm:$0xf]
      %v2171 = vld [vmem:[#allocation9 + $0x154] sm:$0xf]
      %v2172 = vld [vmem:[#allocation9 + $0x158] sm:$0xf]
      %v2173 = vld [vmem:[#allocation9 + $0x15c] sm:$0xf]
      %v2174 = vld [vmem:[#allocation9 + $0x160] sm:$0xf]
      %v2175 = vld [vmem:[#allocation9 + $0x164] sm:$0xf]
      %v2176 = vld [vmem:[#allocation9 + $0x168] sm:$0xf]
      %v2177 = vld [vmem:[#allocation9 + $0x16c] sm:$0xf]
      %v2178 = vld [vmem:[#allocation9 + $0x170] sm:$0xf]
      %v2179 = vld [vmem:[#allocation9 + $0x174] sm:$0xf]
      %v2180 = vld [vmem:[#allocation9 + $0x178] sm:$0xf]
      %v2181 = vld [vmem:[#allocation9 + $0x17c] sm:$0xf]
      %v2182 = vld [vmem:[%s6] sm:$0x1]
      %v2184 = vlaneseq
      %v2185 = vshrl.u32 %v2184, 7
      %v2186 = vsub.s32 0, %v2185
      %v2187 = vrot.slane %v2182, %v2186
      %v2285 = vunpack.c.l.b16 %v2086
      %v2286 = vunpack.c.l.b16 %v2087
      %v2287 = vunpack.c.l.b16 %v2088
      %v2288 = vunpack.c.l.b16 %v2089
      %v2289 = vunpack.c.l.b16 %v2090
      %v2290 = vunpack.c.l.b16 %v2091
      %v2291 = vunpack.c.l.b16 %v2092
      %v2292 = vunpack.c.l.b16 %v2093
      %v2293 = vunpack.c.l.b16 %v2094
      %v2294 = vunpack.c.l.b16 %v2095
      %v2295 = vunpack.c.l.b16 %v2096
      %v2296 = vunpack.c.l.b16 %v2097
      %v2297 = vunpack.c.l.b16 %v2098
      %v2298 = vunpack.c.l.b16 %v2099
      %v2299 = vunpack.c.l.b16 %v2100
      %v2300 = vunpack.c.l.b16 %v2101
      %v2301 = vunpack.c.l.b16 %v2102
      %v2302 = vunpack.c.l.b16 %v2103
      %v2303 = vunpack.c.l.b16 %v2104
      %v2304 = vunpack.c.l.b16 %v2105
      %v2305 = vunpack.c.l.b16 %v2106
      %v2306 = vunpack.c.l.b16 %v2107
      %v2307 = vunpack.c.l.b16 %v2108
      %v2308 = vunpack.c.l.b16 %v2109
      %v2309 = vunpack.c.l.b16 %v2110
      %v2310 = vunpack.c.l.b16 %v2111
      %v2311 = vunpack.c.l.b16 %v2112
      %v2312 = vunpack.c.l.b16 %v2113
      %v2313 = vunpack.c.l.b16 %v2114
      %v2314 = vunpack.c.l.b16 %v2115
      %v2315 = vunpack.c.l.b16 %v2116
      %v2316 = vunpack.c.l.b16 %v2117
      %v2317 = vunpack.c.l.b16 %v2118
      %v2318 = vunpack.c.l.b16 %v2119
      %v2319 = vunpack.c.l.b16 %v2120
      %v2320 = vunpack.c.l.b16 %v2121
      %v2321 = vunpack.c.l.b16 %v2122
      %v2322 = vunpack.c.l.b16 %v2123
      %v2323 = vunpack.c.l.b16 %v2124
      %v2324 = vunpack.c.l.b16 %v2125
      %v2325 = vunpack.c.l.b16 %v2126
      %v2326 = vunpack.c.l.b16 %v2127
      %v2327 = vunpack.c.l.b16 %v2128
      %v2328 = vunpack.c.l.b16 %v2129
      %v2329 = vunpack.c.l.b16 %v2130
      %v2330 = vunpack.c.l.b16 %v2131
      %v2331 = vunpack.c.l.b16 %v2132
      %v2332 = vunpack.c.l.b16 %v2133
      %v2333 = vunpack.c.l.b16 %v2134
      %v2334 = vunpack.c.l.b16 %v2135
      %v2335 = vunpack.c.l.b16 %v2136
      %v2336 = vunpack.c.l.b16 %v2137
      %v2337 = vunpack.c.l.b16 %v2138
      %v2338 = vunpack.c.l.b16 %v2139
      %v2339 = vunpack.c.l.b16 %v2140
      %v2340 = vunpack.c.l.b16 %v2141
      %v2341 = vunpack.c.l.b16 %v2142
      %v2342 = vunpack.c.l.b16 %v2143
      %v2343 = vunpack.c.l.b16 %v2144
      %v2344 = vunpack.c.l.b16 %v2145
      %v2345 = vunpack.c.l.b16 %v2146
      %v2346 = vunpack.c.l.b16 %v2147
      %v2347 = vunpack.c.l.b16 %v2148
      %v2348 = vunpack.c.l.b16 %v2149
      %v2349 = vunpack.c.l.b16 %v2150
      %v2350 = vunpack.c.l.b16 %v2151
      %v2351 = vunpack.c.l.b16 %v2152
      %v2352 = vunpack.c.l.b16 %v2153
      %v2353 = vunpack.c.l.b16 %v2154
      %v2354 = vunpack.c.l.b16 %v2155
      %v2355 = vunpack.c.l.b16 %v2156
      %v2356 = vunpack.c.l.b16 %v2157
      %v2357 = vunpack.c.l.b16 %v2158
      %v2358 = vunpack.c.l.b16 %v2159
      %v2359 = vunpack.c.l.b16 %v2160
      %v2360 = vunpack.c.l.b16 %v2161
      %v2361 = vunpack.c.l.b16 %v2162
      %v2362 = vunpack.c.l.b16 %v2163
      %v2363 = vunpack.c.l.b16 %v2164
      %v2364 = vunpack.c.l.b16 %v2165
      %v2365 = vunpack.c.l.b16 %v2166
      %v2366 = vunpack.c.l.b16 %v2167
      %v2367 = vunpack.c.l.b16 %v2168
      %v2368 = vunpack.c.l.b16 %v2169
      %v2369 = vunpack.c.l.b16 %v2170
      %v2370 = vunpack.c.l.b16 %v2171
      %v2371 = vunpack.c.l.b16 %v2172
      %v2372 = vunpack.c.l.b16 %v2173
      %v2373 = vunpack.c.l.b16 %v2174
      %v2374 = vunpack.c.l.b16 %v2175
      %v2375 = vunpack.c.l.b16 %v2176
      %v2376 = vunpack.c.l.b16 %v2177
      %v2377 = vunpack.c.l.b16 %v2178
      %v2378 = vunpack.c.l.b16 %v2179
      %v2379 = vunpack.c.l.b16 %v2180
      %v2380 = vunpack.c.l.b16 %v2181
      %v2381 = vpack.c.b16 %v2286, %v2285
      %v2382 = vpack.c.b16 %v2288, %v2287
      %v2383 = vpack.c.b16 %v2290, %v2289
      %v2384 = vpack.c.b16 %v2292, %v2291
      %v2385 = vpack.c.b16 %v2294, %v2293
      %v2386 = vpack.c.b16 %v2296, %v2295
      %v2387 = vpack.c.b16 %v2298, %v2297
      %v2388 = vpack.c.b16 %v2300, %v2299
      %v2389 = vpack.c.b16 %v2302, %v2301
      %v2390 = vpack.c.b16 %v2304, %v2303
      %v2391 = vpack.c.b16 %v2306, %v2305
      %v2392 = vpack.c.b16 %v2308, %v2307
      %v2393 = vpack.c.b16 %v2310, %v2309
      %v2394 = vpack.c.b16 %v2312, %v2311
      %v2395 = vpack.c.b16 %v2314, %v2313
      %v2396 = vpack.c.b16 %v2316, %v2315
      %v2397 = vpack.c.b16 %v2318, %v2317
      %v2398 = vpack.c.b16 %v2320, %v2319
      %v2399 = vpack.c.b16 %v2322, %v2321
      %v2400 = vpack.c.b16 %v2324, %v2323
      %v2401 = vpack.c.b16 %v2326, %v2325
      %v2402 = vpack.c.b16 %v2328, %v2327
      %v2403 = vpack.c.b16 %v2330, %v2329
      %v2404 = vpack.c.b16 %v2332, %v2331
      %v2405 = vpack.c.b16 %v2334, %v2333
      %v2406 = vpack.c.b16 %v2336, %v2335
      %v2407 = vpack.c.b16 %v2338, %v2337
      %v2408 = vpack.c.b16 %v2340, %v2339
      %v2409 = vpack.c.b16 %v2342, %v2341
      %v2410 = vpack.c.b16 %v2344, %v2343
      %v2411 = vpack.c.b16 %v2346, %v2345
      %v2412 = vpack.c.b16 %v2348, %v2347
      %v2413 = vpack.c.b16 %v2350, %v2349
      %v2414 = vpack.c.b16 %v2352, %v2351
      %v2415 = vpack.c.b16 %v2354, %v2353
      %v2416 = vpack.c.b16 %v2356, %v2355
      %v2417 = vpack.c.b16 %v2358, %v2357
      %v2418 = vpack.c.b16 %v2360, %v2359
      %v2419 = vpack.c.b16 %v2362, %v2361
      %v2420 = vpack.c.b16 %v2364, %v2363
      %v2421 = vpack.c.b16 %v2366, %v2365
      %v2422 = vpack.c.b16 %v2368, %v2367
      %v2423 = vpack.c.b16 %v2370, %v2369
      %v2424 = vpack.c.b16 %v2372, %v2371
      %v2425 = vpack.c.b16 %v2374, %v2373
      %v2426 = vpack.c.b16 %v2376, %v2375
      %v2427 = vpack.c.b16 %v2378, %v2377
      %v2428 = vpack.c.b16 %v2380, %v2379
      %2477 = vmatprep.subr.bf16.mxu0 0
      %2478 = vmatpush1.bf16.msra.mxu0 %v2381
      %2479 = vmatprep.subr.bf16.mxu0 0
      %2480 = vmatpush1.bf16.msra.mxu0 %v2382
      %2481 = vmatprep.subr.bf16.mxu0 0
      %2482 = vmatpush1.bf16.msra.mxu0 %v2383
      %2483 = vmatprep.subr.bf16.mxu0 0
      %2484 = vmatpush1.bf16.msra.mxu0 %v2384
      %2485 = vmatprep.subr.bf16.mxu0 0
      %2486 = vmatpush1.bf16.msra.mxu0 %v2385
      %2487 = vmatprep.subr.bf16.mxu0 0
      %2488 = vmatpush1.bf16.msra.mxu0 %v2386
      %2489 = vmatprep.subr.bf16.mxu0 0
      %2490 = vmatpush1.bf16.msra.mxu0 %v2387
      %2491 = vmatprep.subr.bf16.mxu0 0
      %2492 = vmatpush1.bf16.msra.mxu0 %v2388
      %2493 = vmatprep.subr.bf16.mxu0 0
      %2494 = vmatpush1.bf16.msra.mxu0 %v2389
      %2495 = vmatprep.subr.bf16.mxu0 0
      %2496 = vmatpush1.bf16.msra.mxu0 %v2390
      %2497 = vmatprep.subr.bf16.mxu0 0
      %2498 = vmatpush1.bf16.msra.mxu0 %v2391
      %2499 = vmatprep.subr.bf16.mxu0 0
      %2500 = vmatpush1.bf16.msra.mxu0 %v2392
      %2501 = vmatprep.subr.bf16.mxu0 0
      %2502 = vmatpush1.bf16.msra.mxu0 %v2393
      %2503 = vmatprep.subr.bf16.mxu0 0
      %2504 = vmatpush1.bf16.msra.mxu0 %v2394
      %2505 = vmatprep.subr.bf16.mxu0 0
      %2506 = vmatpush1.bf16.msra.mxu0 %v2395
      %2507 = vmatprep.subr.bf16.mxu0 0
      %2508 = vmatpush1.bf16.msra.mxu0 %v2396
      %2509 = vmatprep.mubr.bf16.mxu0 %v2081
      %2510 = vmatmul.mubr.bf16.gmra.mrb[0].mxu0 %v2080
      %v2511 = vpop.f32.mrb[0].mxu0
      %v2512 = vadd.f32 %v2187, %v2511
      %v2513 = vpop.f32.mrb[0].mxu0
      %v2514 = vpop.f32.mrb[0].mxu0
      %v2515 = vpop.f32.mrb[0].mxu0
      %2516 = vdwg.mxu0
      %2517 = vmatprep.subr.bf16.mxu0 0
      %2518 = vmatpush1.bf16.msra.mxu0 %v2397
      %2519 = vmatprep.subr.bf16.mxu0 0
      %2520 = vmatpush1.bf16.msra.mxu0 %v2398
      %2521 = vmatprep.subr.bf16.mxu0 0
      %2522 = vmatpush1.bf16.msra.mxu0 %v2399
      %2523 = vmatprep.subr.bf16.mxu0 0
      %2524 = vmatpush1.bf16.msra.mxu0 %v2400
      %2525 = vmatprep.subr.bf16.mxu0 0
      %2526 = vmatpush1.bf16.msra.mxu0 %v2401
      %2527 = vmatprep.subr.bf16.mxu0 0
      %2528 = vmatpush1.bf16.msra.mxu0 %v2402
      %2529 = vmatprep.subr.bf16.mxu0 0
      %2530 = vmatpush1.bf16.msra.mxu0 %v2403
      %2531 = vmatprep.subr.bf16.mxu0 0
      %2532 = vmatpush1.bf16.msra.mxu0 %v2404
      %2533 = vmatprep.subr.bf16.mxu0 0
      %2534 = vmatpush1.bf16.msra.mxu0 %v2405
      %2535 = vmatprep.subr.bf16.mxu0 0
      %2536 = vmatpush1.bf16.msra.mxu0 %v2406
      %2537 = vmatprep.subr.bf16.mxu0 0
      %2538 = vmatpush1.bf16.msra.mxu0 %v2407
      %2539 = vmatprep.subr.bf16.mxu0 0
      %2540 = vmatpush1.bf16.msra.mxu0 %v2408
      %2541 = vmatprep.subr.bf16.mxu0 0
      %2542 = vmatpush1.bf16.msra.mxu0 %v2409
      %2543 = vmatprep.subr.bf16.mxu0 0
      %2544 = vmatpush1.bf16.msra.mxu0 %v2410
      %2545 = vmatprep.subr.bf16.mxu0 0
      %2546 = vmatpush1.bf16.msra.mxu0 %v2411
      %2547 = vmatprep.subr.bf16.mxu0 0
      %2548 = vmatpush1.bf16.msra.mxu0 %v2412
      %2549 = vmatprep.mubr.bf16.mxu0 %v2083
      %2550 = vmatmul.mubr.bf16.gmra.mrb[0].mxu0 %v2082
      %v2551 = vpop.f32.mrb[0].mxu0
      %v2552 = vadd.f32 %v2512, %v2551
      %v2553 = vpop.f32.mrb[0].mxu0
      %v2554 = vpop.f32.mrb[0].mxu0
      %v2555 = vpop.f32.mrb[0].mxu0
      %2556 = vdwg.mxu0
      %2557 = vmatprep.subr.bf16.mxu0 0
      %2558 = vmatpush1.bf16.msra.mxu0 %v2413
      %2559 = vmatprep.subr.bf16.mxu0 0
      %2560 = vmatpush1.bf16.msra.mxu0 %v2414
      %2561 = vmatprep.subr.bf16.mxu0 0
      %2562 = vmatpush1.bf16.msra.mxu0 %v2415
      %2563 = vmatprep.subr.bf16.mxu0 0
      %2564 = vmatpush1.bf16.msra.mxu0 %v2416
      %2565 = vmatprep.subr.bf16.mxu0 0
      %2566 = vmatpush1.bf16.msra.mxu0 %v2417
      %2567 = vmatprep.subr.bf16.mxu0 0
      %2568 = vmatpush1.bf16.msra.mxu0 %v2418
      %2569 = vmatprep.subr.bf16.mxu0 0
      %2570 = vmatpush1.bf16.msra.mxu0 %v2419
      %2571 = vmatprep.subr.bf16.mxu0 0
      %2572 = vmatpush1.bf16.msra.mxu0 %v2420
      %2573 = vmatprep.subr.bf16.mxu0 0
      %2574 = vmatpush1.bf16.msra.mxu0 %v2421
      %2575 = vmatprep.subr.bf16.mxu0 0
      %2576 = vmatpush1.bf16.msra.mxu0 %v2422
      %2577 = vmatprep.subr.bf16.mxu0 0
      %2578 = vmatpush1.bf16.msra.mxu0 %v2423
      %2579 = vmatprep.subr.bf16.mxu0 0
      %2580 = vmatpush1.bf16.msra.mxu0 %v2424
      %2581 = vmatprep.subr.bf16.mxu0 0
      %2582 = vmatpush1.bf16.msra.mxu0 %v2425
      %2583 = vmatprep.subr.bf16.mxu0 0
      %2584 = vmatpush1.bf16.msra.mxu0 %v2426
      %2585 = vmatprep.subr.bf16.mxu0 0
      %2586 = vmatpush1.bf16.msra.mxu0 %v2427
      %2587 = vmatprep.subr.bf16.mxu0 0
      %2588 = vmatpush1.bf16.msra.mxu0 %v2428
      %2589 = vmatprep.mubr.bf16.mxu0 %v2085
      %2590 = vmatmul.mubr.bf16.gmra.mrb[0].mxu0 %v2084
      %v2591 = vpop.f32.mrb[0].mxu0
      %v2592 = vadd.f32 %v2552, %v2591
      %v2593 = vpop.f32.mrb[0].mxu0
      %v2594 = vpop.f32.mrb[0].mxu0
      %v2595 = vpop.f32.mrb[0].mxu0
      %2596 = vdwg.mxu0
      %2597 = vst [vmem:[#allocation11] sm:$0xff] %v2592
    $region53: #{tpu_custom_call.1} parent=1 // pred_fallthru
      _
    // Predicated region
    $region54: #{tpu_custom_call.1} parent=1 // pred_check
      _
    $region55: #{tpu_custom_call.1} parent=1 // pred_check_branch
      %2599 = sbr.rel (0) target = $region57
    $region56: #{tpu_custom_call.1} parent=1 // pred_region
      %s2601 = ssub.s32 128, 32
      %2602 = vsyncadd [#allocation5], %s2601
      %s2603 = sshll.u32 [#allocation11], 4
      %s2604 = int_to_ptr.vmem [resolvable:$true] %s2603
      %2609 = dma.vmem_to_hbm [thread:$0]  %s2604, 32, %s7, [#allocation5], 32, 32, 2
    $region57: #{tpu_custom_call.1} parent=1 // pred_fallthru
      _
    // Predicated region
    $region58: #{tpu_custom_call.1} parent=1 // pred_check
      _
    $region59: #{tpu_custom_call.1} parent=1 // pred_check_branch
      %2611 = sbr.rel (0) target = $region61
    $region60: #{tpu_custom_call.1} parent=1 // pred_region
      %2612 = dma.done [#allocation5], 128
    $region61: #{tpu_custom_call.1} parent=1 // pred_fallthru
      _
    %2613 = vsyncpa [#allocation4], 1
    %2614 = vsyncpa [#allocation7], 1
    %2615 = vsyncpa [#allocation10], 1
    %2616 = vsyncpa [#allocation5], 1

</llo_original>
